<compile_context>
chip_gen: v7x
topology: tpu7x:2x2x1
jax: 0.10.0
libtpu: 0.0.40
codegen_flags: <defaults>
</compile_context>

<pallas_src>
import math
import numpy as np
import jax
import jax.numpy as jnp
from jax.experimental import pallas as pl
from jax.experimental.pallas import tpu as pltpu


# ----------------------------- config (cfg['data']) -----------------------------
SAMPLE_RATE = 16000
N_FFT       = 128
HOP_LENGTH  = 64
N_MELS      = 32
FMIN        = 20.0
FMAX        = SAMPLE_RATE / 2
AMIN        = 1e-10
REF         = 1.0
# top_db = None -> no clamping

FREQ_BINS = N_FFT // 2 + 1            # 65
FREQ_PAD  = 128                       # freq axis padded to lane width (zero cols -> no effect)
RI_WIDTH  = 2 * FREQ_PAD              # packed [Wr | Wi] matmul output width = 256

LOG_REF_OFFSET = 10.0 * math.log10(max(AMIN, REF))   # ref = 1.0 -> 0.0

assert 2 * HOP_LENGTH == N_FFT, "split-K framing requires hop == n_fft / 2"


# ----------------------------- parameter construction (numpy) -----------------------------
def _hz_to_mel(f):
    # Slaney mel scale (librosa default, htk=False)
    f = np.asarray(f, dtype=np.float64)
    f_sp = 200.0 / 3
    mels = f / f_sp
    min_log_hz = 1000.0
    min_log_mel = min_log_hz / f_sp
    logstep = math.log(6.4) / 27.0
    return np.where(f >= min_log_hz,
                    min_log_mel + np.log(np.maximum(f, 1e-20) / min_log_hz) / logstep, mels)


def _mel_to_hz(m):
    m = np.asarray(m, dtype=np.float64)
    f_sp = 200.0 / 3
    freqs = f_sp * m
    min_log_hz = 1000.0
    min_log_mel = min_log_hz / f_sp
    logstep = math.log(6.4) / 27.0
    return np.where(m >= min_log_mel, min_log_hz * np.exp(logstep * (m - min_log_mel)), freqs)


def mel_filterbank(sr, n_fft, n_mels, fmin, fmax):
    """librosa.filters.mel equivalent (slaney norm), returned as (freq_bins, n_mels)."""
    fftfreqs = np.linspace(0.0, sr / 2.0, n_fft // 2 + 1)
    mel_f = _mel_to_hz(np.linspace(_hz_to_mel(fmin), _hz_to_mel(fmax), n_mels + 2))
    fdiff = np.diff(mel_f)
    ramps = mel_f[:, None] - fftfreqs[None, :]
    weights = np.zeros((n_mels, n_fft // 2 + 1), dtype=np.float64)
    for i in range(n_mels):
        lower = -ramps[i] / fdiff[i]
        upper = ramps[i + 2] / fdiff[i + 1]
        weights[i] = np.maximum(0.0, np.minimum(lower, upper))
    enorm = 2.0 / (mel_f[2:n_mels + 2] - mel_f[:n_mels])
    weights *= enorm[:, None]
    return weights.T.astype(np.float32)  # (freq_bins, n_mels)


def stft_matrix_packed(n_fft):
    """Packed windowed-DFT matrix (n_fft, 256): cols [0:128) = real (cos), [128:256) = imag (-sin).

    Only the first FREQ_BINS columns of each half are nonzero; padding columns are zero so they
    contribute nothing downstream. Hann-periodic window (fftbins=True), matching torchlibrosa STFT.
    """
    n = np.arange(n_fft)
    window = 0.5 - 0.5 * np.cos(2.0 * np.pi * n / n_fft)           # periodic hann
    k = np.arange(FREQ_BINS)
    ang = 2.0 * np.pi * np.outer(n, k) / n_fft                     # (n_fft, freq_bins)
    wr = (np.cos(ang) * window[:, None]).astype(np.float32)
    wi = (-np.sin(ang) * window[:, None]).astype(np.float32)
    wri = np.zeros((n_fft, RI_WIDTH), dtype=np.float32)
    wri[:, :FREQ_BINS] = wr
    wri[:, FREQ_PAD:FREQ_PAD + FREQ_BINS] = wi
    return wri


def mel_matrix_freqpad():
    """(FREQ_PAD, N_MELS) mel filterbank; freq axis zero-padded to 128, mel axis at true width."""
    melw = np.zeros((FREQ_PAD, N_MELS), dtype=np.float32)
    melw[:FREQ_BINS, :] = mel_filterbank(SAMPLE_RATE, N_FFT, N_MELS, FMIN, FMAX)
    return melw


# ----------------------------- Pallas kernel -----------------------------
def logmel_kernel(chunks_ref, wlo_ref, whi_ref, melw_ref, out_ref):
    """One grid step = one (batch*channel) audio row; T frames produced via split-K framing."""
    T = out_ref.shape[1]
    hp = jax.lax.Precision.HIGHEST
    c = chunks_ref[0]                                   # (T+1, hop) hop-sized audio chunks
    # Frame t = [chunk t | chunk t+1]  ->  dot with the two halves of the packed [Wr|Wi] matrix.
    ri = jnp.dot(c[:T, :], wlo_ref[...],
                 preferred_element_type=jnp.float32, precision=hp)         # (T, 256)
    ri = ri + jnp.dot(c[1:T + 1, :], whi_ref[...],
                      preferred_element_type=jnp.float32, precision=hp)    # (T, 256) = [re | im]
    re = ri[:, :FREQ_PAD]                               # aligned lane slices
    im = ri[:, FREQ_PAD:]
    power = re * re + im * im                           # spectrogram_STFTInput     (T, 128)
    mel = jnp.dot(power, melw_ref[...],
                  preferred_element_type=jnp.float32, precision=hp)        # (T, n_mels)
    out_ref[0] = 10.0 * jnp.log10(jnp.maximum(mel, AMIN)) - LOG_REF_OFFSET


def logmel_pallas(chunks, wri_lo, wri_hi, melw, T):
    """chunks: (B*C, T+1, hop) f32 -> (B*C, T, n_mels) f32."""
    BC = chunks.shape[0]
    M = BC * T
    cost = pl.CostEstimate(
        flops=int(M * (2 * 2 * HOP_LENGTH * RI_WIDTH + 2 * FREQ_PAD * N_MELS)),
        transcendentals=int(M * N_MELS),
        bytes_accessed=int(BC * (T + 1) * HOP_LENGTH * 4 + M * N_MELS * 4
                           + (2 * HOP_LENGTH * RI_WIDTH + FREQ_PAD * N_MELS) * 4),
    )
    return pl.pallas_call(
        logmel_kernel,
        out_shape=jax.ShapeDtypeStruct((BC, T, N_MELS), jnp.float32),
        grid_spec=pltpu.PrefetchScalarGridSpec(
            num_scalar_prefetch=0,
            grid=(BC,),
            in_specs=[
                pl.BlockSpec((1, T + 1, HOP_LENGTH),    lambda i: (i, 0, 0)),
                pl.BlockSpec((HOP_LENGTH, RI_WIDTH),    lambda i: (0, 0)),
                pl.BlockSpec((HOP_LENGTH, RI_WIDTH),    lambda i: (0, 0)),
                pl.BlockSpec((FREQ_PAD, N_MELS),        lambda i: (0, 0)),
            ],
            out_specs=pl.BlockSpec((1, T, N_MELS), lambda i: (i, 0, 0)),
        ),
        compiler_params=pltpu.CompilerParams(
            dimension_semantics=("parallel",),
            vmem_limit_bytes=32 * 1024 * 1024,
        ),
        cost_estimate=cost,
    )(chunks, wri_lo, wri_hi, melw)


# ----------------------------- wrapper: reflect pad + free chunk reshape -----------------------------
def logmel_extractor(x, wri_lo, wri_hi, melw):
    """x: (B, C, L) float32 -> (B, C, T, n_mels), T = L // hop + 1 (center=True, reflect pad)."""
    if x.ndim != 3:
        raise ValueError(f"x shape must be (batch_size, num_channels, data_length); got {x.shape}")
    B, C, L = x.shape
    pad = N_FFT // 2
    T = L // HOP_LENGTH + 1
    xp = jnp.pad(x, ((0, 0), (0, 0), (pad, pad)), mode="reflect")
    xp = xp[..., :(T + 1) * HOP_LENGTH]                              # drop unused tail (no-op if L%hop==0)
    chunks = xp.reshape(B * C, T + 1, HOP_LENGTH).astype(jnp.float32)  # pure reshape, no gather/copy slab
    out = logmel_pallas(chunks, wri_lo, wri_hi, melw, T)             # (B*C, T, n_mels)
    return out.reshape(B, C, T, N_MELS)


# ----------------------------- pure-JAX reference for validation (gather-framing path) -----------------
def logmel_reference(x, wri_lo, wri_hi, melw):
    B, C, L = x.shape
    pad = N_FFT // 2
    xp = jnp.pad(x, ((0, 0), (0, 0), (pad, pad)), mode="reflect")
    T = L // HOP_LENGTH + 1
    idx = np.arange(T)[:, None] * HOP_LENGTH + np.arange(N_FFT)[None, :]
    frames = xp[:, :, idx].astype(jnp.float32)                       # (B, C, T, n_fft) via gather
    wri = jnp.concatenate([wri_lo, wri_hi], axis=0)                  # (n_fft, 256)
    hp = jax.lax.Precision.HIGHEST
    ri = jnp.einsum("bctn,nf->bctf", frames, wri, precision=hp)
    re = ri[..., :FREQ_PAD]
    im = ri[..., FREQ_PAD:]
    power = re * re + im * im
    mel = jnp.einsum("bctf,fm->bctm", power, melw, precision=hp)
    return 10.0 * jnp.log10(jnp.maximum(mel, AMIN)) - LOG_REF_OFFSET


if __name__ == "__main__":
    key = jax.random.PRNGKey(0)
    B, C, L = 2, 4, 1024
    x = jax.random.normal(key, (B, C, L), dtype=jnp.float32)

    wri = stft_matrix_packed(N_FFT)
    wri_lo = jnp.asarray(wri[:HOP_LENGTH])        # (64, 256) — first-half-of-frame DFT weights
    wri_hi = jnp.asarray(wri[HOP_LENGTH:])        # (64, 256) — second-half-of-frame DFT weights
    melw = jnp.asarray(mel_matrix_freqpad())      # (128, 32)

    out = logmel_extractor(x, wri_lo, wri_hi, melw)
    out = jax.block_until_ready(out)
    T = L // HOP_LENGTH + 1
    assert out.shape == (B, C, T, N_MELS), out.shape

    ref = jax.block_until_ready(logmel_reference(x, wri_lo, wri_hi, melw))
    np.testing.assert_allclose(np.asarray(out), np.asarray(ref), rtol=1e-3, atol=1e-3)

    print("KERNEL_OK")
</pallas_src>

<mosaic_0001>
module attributes {stable_mosaic.version = 11 : i64} {
  func.func @logmel_kernel(%arg0: i32, %arg1: memref<1x18x64xf32, #tpu.memory_space<vmem>>, %arg2: memref<64x256xf32, #tpu.memory_space<vmem>>, %arg3: memref<64x256xf32, #tpu.memory_space<vmem>>, %arg4: memref<128x32xf32, #tpu.memory_space<vmem>>, %arg5: memref<1x17x32xf32, #tpu.memory_space<vmem>>) attributes {dimension_semantics = [#tpu.dimension_semantics<parallel>], iteration_bounds = array<i64: 8>, scalar_prefetch = 0 : i64, scratch_operands = 0 : i64, tpu.core_type = #tpu.core_type<tc>, window_params = [{transform_indices = @transform_0, window_bounds = array<i64: 1, 18, 64>}, {pipeline_mode = #tpu.pipeline_mode<synchronous>, transform_indices = @transform_1, window_bounds = array<i64: 64, 256>}, {pipeline_mode = #tpu.pipeline_mode<synchronous>, transform_indices = @transform_2, window_bounds = array<i64: 64, 256>}, {pipeline_mode = #tpu.pipeline_mode<synchronous>, transform_indices = @transform_3, window_bounds = array<i64: 128, 32>}, {transform_indices = @transform_4, window_bounds = array<i64: 1, 17, 32>}]} {
    %c0 = arith.constant 0 : index
    %c0_0 = arith.constant 0 : index
    %c0_1 = arith.constant 0 : index
    %0 = vector.load %arg1[%c0, %c0_0, %c0_1] : memref<1x18x64xf32, #tpu.memory_space<vmem>>, vector<1x18x64xf32>
    %1 = vector.shape_cast %0 : vector<1x18x64xf32> to vector<18x64xf32>
    %2 = vector.extract_strided_slice %1 {offsets = [0, 0], sizes = [17, 64], strides = [1, 1]} : vector<18x64xf32> to vector<17x64xf32>
    %c0_2 = arith.constant 0 : index
    %c0_3 = arith.constant 0 : index
    %3 = vector.load %arg2[%c0_2, %c0_3] : memref<64x256xf32, #tpu.memory_space<vmem>>, vector<64x256xf32>
    %cst = arith.constant dense<0.000000e+00> : vector<17x256xf32>
    %4 = tpu.matmul %2, %3, %cst {dimension_numbers = #tpu.dot_dimension_numbers<[1], [0], [0], [1], [0, 0, 1, 1], [], []>, precision = #tpu.contract_precision<fp32>} : vector<17x64xf32>, vector<64x256xf32>, vector<17x256xf32> -> vector<17x256xf32>
    %5 = vector.extract_strided_slice %1 {offsets = [1, 0], sizes = [17, 64], strides = [1, 1]} : vector<18x64xf32> to vector<17x64xf32>
    %c0_4 = arith.constant 0 : index
    %c0_5 = arith.constant 0 : index
    %6 = vector.load %arg3[%c0_4, %c0_5] : memref<64x256xf32, #tpu.memory_space<vmem>>, vector<64x256xf32>
    %cst_6 = arith.constant dense<0.000000e+00> : vector<17x256xf32>
    %7 = tpu.matmul %5, %6, %cst_6 {dimension_numbers = #tpu.dot_dimension_numbers<[1], [0], [0], [1], [0, 0, 1, 1], [], []>, precision = #tpu.contract_precision<fp32>} : vector<17x64xf32>, vector<64x256xf32>, vector<17x256xf32> -> vector<17x256xf32>
    %8 = arith.addf %4, %7 : vector<17x256xf32>
    %9 = vector.extract_strided_slice %8 {offsets = [0, 0], sizes = [17, 128], strides = [1, 1]} : vector<17x256xf32> to vector<17x128xf32>
    %10 = vector.extract_strided_slice %8 {offsets = [0, 128], sizes = [17, 128], strides = [1, 1]} : vector<17x256xf32> to vector<17x128xf32>
    %11 = arith.mulf %9, %9 : vector<17x128xf32>
    %12 = arith.mulf %10, %10 : vector<17x128xf32>
    %13 = arith.addf %11, %12 : vector<17x128xf32>
    %c0_7 = arith.constant 0 : index
    %c0_8 = arith.constant 0 : index
    %14 = vector.load %arg4[%c0_7, %c0_8] : memref<128x32xf32, #tpu.memory_space<vmem>>, vector<128x32xf32>
    %cst_9 = arith.constant dense<0.000000e+00> : vector<17x32xf32>
    %15 = tpu.matmul %13, %14, %cst_9 {dimension_numbers = #tpu.dot_dimension_numbers<[1], [0], [0], [1], [0, 0, 1, 1], [], []>, precision = #tpu.contract_precision<fp32>} : vector<17x128xf32>, vector<128x32xf32>, vector<17x32xf32> -> vector<17x32xf32>
    %cst_10 = arith.constant 1.000000e-10 : f32
    %16 = vector.broadcast %cst_10 : f32 to vector<17x32xf32>
    %17 = arith.maximumf %15, %16 : vector<17x32xf32>
    %18 = math.log %17 : vector<17x32xf32>
    %cst_11 = arith.constant 0.434294492 : f32
    %19 = vector.broadcast %cst_11 : f32 to vector<17x32xf32>
    %20 = arith.mulf %18, %19 : vector<17x32xf32>
    %cst_12 = arith.constant 1.000000e+01 : f32
    %21 = vector.broadcast %cst_12 : f32 to vector<17x32xf32>
    %22 = arith.mulf %21, %20 : vector<17x32xf32>
    %cst_13 = arith.constant 0.000000e+00 : f32
    %23 = vector.broadcast %cst_13 : f32 to vector<17x32xf32>
    %24 = arith.subf %22, %23 : vector<17x32xf32>
    %c0_14 = arith.constant 0 : index
    %c0_15 = arith.constant 0 : index
    %c0_16 = arith.constant 0 : index
    %25 = vector.load %arg5[%c0_14, %c0_15, %c0_16] : memref<1x17x32xf32, #tpu.memory_space<vmem>>, vector<1x17x32xf32>
    %26 = vector.shape_cast %25 : vector<1x17x32xf32> to vector<17x32xf32>
    %27 = vector.shape_cast %24 : vector<17x32xf32> to vector<1x17x32xf32>
    tpu.vector_store %arg5[%c0_14, %c0_15, %c0_16], %27 {strides = array<i32>} : memref<1x17x32xf32, #tpu.memory_space<vmem>>, vector<1x17x32xf32>,
    return
  }
  func.func @transform_0(%arg0: i32) -> (i32, i32, i32) {
    %c0_i32 = arith.constant 0 : i32
    %c0_i32_0 = arith.constant 0 : i32
    %c0_i32_1 = arith.constant 0 : i32
    return %arg0, %c0_i32, %c0_i32_0 : i32, i32, i32
  }
  func.func @transform_1(%arg0: i32) -> (i32, i32) {
    %c0_i32 = arith.constant 0 : i32
    %c0_i32_0 = arith.constant 0 : i32
    %c0_i32_1 = arith.constant 0 : i32
    return %c0_i32, %c0_i32_0 : i32, i32
  }
  func.func @transform_2(%arg0: i32) -> (i32, i32) {
    %c0_i32 = arith.constant 0 : i32
    %c0_i32_0 = arith.constant 0 : i32
    %c0_i32_1 = arith.constant 0 : i32
    return %c0_i32, %c0_i32_0 : i32, i32
  }
  func.func @transform_3(%arg0: i32) -> (i32, i32) {
    %c0_i32 = arith.constant 0 : i32
    %c0_i32_0 = arith.constant 0 : i32
    %c0_i32_1 = arith.constant 0 : i32
    return %c0_i32, %c0_i32_0 : i32, i32
  }
  func.func @transform_4(%arg0: i32) -> (i32, i32, i32) {
    %c0_i32 = arith.constant 0 : i32
    %c0_i32_0 = arith.constant 0 : i32
    %c0_i32_1 = arith.constant 0 : i32
    return %arg0, %c0_i32, %c0_i32_0 : i32, i32, i32
  }
}

</mosaic_0001>

<llo_original>
// kernel: tpu_custom_call.1
$region0: #{tpu_custom_call.1}
  #allocation0 [shape = 'u32[]', space=smem, size = 0x4, offset = 0x4, fixed_abs, tag = 'smem constant byte address 0x4 - core index']
  #allocation1 [shape = 'u32[144,128]{1,0:T(1,128)}', space=vmem, size = 0x12000, scoped, tag = 'internal scratch']
  %s0 = inlined_call_operand.vmem [shape: f32[8,18,64], index: 0, kind: input, shape index: {}]
  %s1 = inlined_call_operand.vmem [shape: f32[64,256], index: 1, kind: input, shape index: {}]
  %s2 = inlined_call_operand.vmem [shape: f32[64,256], index: 2, kind: input, shape index: {}]
  %s3 = inlined_call_operand.vmem [shape: f32[128,32], index: 3, kind: input, shape index: {}]
  %s4 = inlined_call_operand.vmem [shape: f32[8,17,32], index: 4, kind: output, shape index: {}]
  %s5 = sld [smem:[#allocation0]]
  $region49: #{tpu_custom_call.1} parent=0
    _
  %s7 = ssub.s32 1, %s5
  %s8 = scalar_select 0, %s7, %s5
  loop: start=0, step=1, limit=10
  $region2: #{tpu_custom_call.1} parent=0 // loop_pre_header
    _
  $region3: #{tpu_custom_call.1} parent=0 // loop_header
    %s10 = sphi 0, %s14
    %p11 = scmp.ge.s32.totalorder %s10, 10
    %s20 = sphi 0, %s22
    %s23 = sphi 0, %s20
    %s24 = sphi 0, %s23
    %s40 = sphi 0, %s24
    %s44 = sphi 0, %s44
    %s46 = sphi 0, %s44
    %s47 = sphi 0, %s46
    %s61 = sphi 0, %s47
    %s65 = sphi 0, %s65
    %s67 = sphi 0, %s65
    %s68 = sphi 0, %s67
    %s82 = sphi 0, %s68
    %s86 = sphi 0, %s86
    %s88 = sphi 0, %s86
    %s89 = sphi 0, %s88
    %s103 = sphi 0, %s89
    %s109 = sphi 0, %s111
    %s112 = sphi 0, %s109
    %s113 = sphi 0, %s112
    %s129 = sphi 0, %s113
  $region4: #{tpu_custom_call.1} parent=0 // loop_header_branch
    %13 = sbr.rel (%p11) target = $region8
  $region5: #{tpu_custom_call.1} parent=0 // loop_body
    %s15 = ssub.s32 %s10, 1
    %s16 = ssub.s32 %s10, 2
    %s17 = sadd.s32 %s10, 1
    %s18 = ssub.s32 %s10, %s17
    %p19 = scmp.eq.s32.totalorder %s18, 0
    %s21 = sadd.s32 %s20, 1
    %s22 = scalar_select %p19, %s20, %s21
    %p25 = pneg %p19
    %p26 = scmp.eq.s32.totalorder %s10, 7
    %p27 = por %p25, %p26
    %p28 = scmp.ne.s32.totalorder %s20, %s23
    %p29 = scmp.eq.s32.totalorder %s10, 0
    %p30 = por %p28, %p29
    %p31 = scmp.ne.s32.totalorder %s20, %s23
    %p32 = scmp.eq.s32.totalorder %s15, 7
    %p33 = por %p31, %p32
    %p34 = scmp.ne.s32.totalorder %s23, %s24
    %p35 = scmp.eq.s32.totalorder %s15, 0
    %p36 = por %p34, %p35
    %p37 = scmp.ne.s32.totalorder %s23, %s24
    %p38 = scmp.eq.s32.totalorder %s16, 7
    %p39 = por %p37, %p38
    %p41 = scmp.ne.s32.totalorder %s24, %s40
    %p42 = scmp.eq.s32.totalorder %s16, 0
    %p43 = por %p41, %p42
    %s45 = sadd.s32 %s44, 1
    %p48 = scmp.eq.s32.totalorder %s10, 7
    %p49 = scmp.ne.s32.totalorder %s44, %s46
    %p50 = scmp.eq.s32.totalorder %s10, 0
    %p51 = por %p49, %p50
    %p52 = scmp.ne.s32.totalorder %s44, %s46
    %p53 = scmp.eq.s32.totalorder %s15, 7
    %p54 = por %p52, %p53
    %p55 = scmp.ne.s32.totalorder %s46, %s47
    %p56 = scmp.eq.s32.totalorder %s15, 0
    %p57 = por %p55, %p56
    %p58 = scmp.ne.s32.totalorder %s46, %s47
    %p59 = scmp.eq.s32.totalorder %s16, 7
    %p60 = por %p58, %p59
    %p62 = scmp.ne.s32.totalorder %s47, %s61
    %p63 = scmp.eq.s32.totalorder %s16, 0
    %p64 = por %p62, %p63
    %s66 = sadd.s32 %s65, 1
    %p69 = scmp.eq.s32.totalorder %s10, 7
    %p70 = scmp.ne.s32.totalorder %s65, %s67
    %p71 = scmp.eq.s32.totalorder %s10, 0
    %p72 = por %p70, %p71
    %p73 = scmp.ne.s32.totalorder %s65, %s67
    %p74 = scmp.eq.s32.totalorder %s15, 7
    %p75 = por %p73, %p74
    %p76 = scmp.ne.s32.totalorder %s67, %s68
    %p77 = scmp.eq.s32.totalorder %s15, 0
    %p78 = por %p76, %p77
    %p79 = scmp.ne.s32.totalorder %s67, %s68
    %p80 = scmp.eq.s32.totalorder %s16, 7
    %p81 = por %p79, %p80
    %p83 = scmp.ne.s32.totalorder %s68, %s82
    %p84 = scmp.eq.s32.totalorder %s16, 0
    %p85 = por %p83, %p84
    %s87 = sadd.s32 %s86, 1
    %p90 = scmp.eq.s32.totalorder %s10, 7
    %p91 = scmp.ne.s32.totalorder %s86, %s88
    %p92 = scmp.eq.s32.totalorder %s10, 0
    %p93 = por %p91, %p92
    %p94 = scmp.ne.s32.totalorder %s86, %s88
    %p95 = scmp.eq.s32.totalorder %s15, 7
    %p96 = por %p94, %p95
    %p97 = scmp.ne.s32.totalorder %s88, %s89
    %p98 = scmp.eq.s32.totalorder %s15, 0
    %p99 = por %p97, %p98
    %p100 = scmp.ne.s32.totalorder %s88, %s89
    %p101 = scmp.eq.s32.totalorder %s16, 7
    %p102 = por %p100, %p101
    %p104 = scmp.ne.s32.totalorder %s89, %s103
    %p105 = scmp.eq.s32.totalorder %s16, 0
    %p106 = por %p104, %p105
    %s107 = ssub.s32 %s10, %s17
    %p108 = scmp.eq.s32.totalorder %s107, 0
    %s110 = sadd.s32 %s109, 1
    %s111 = scalar_select %p108, %s109, %s110
    %p114 = pneg %p108
    %p115 = scmp.eq.s32.totalorder %s10, 7
    %p116 = por %p114, %p115
    %p117 = scmp.ne.s32.totalorder %s109, %s112
    %p118 = scmp.eq.s32.totalorder %s10, 0
    %p119 = por %p117, %p118
    %p120 = scmp.ne.s32.totalorder %s109, %s112
    %p121 = scmp.eq.s32.totalorder %s15, 7
    %p122 = por %p120, %p121
    %p123 = scmp.ne.s32.totalorder %s112, %s113
    %p124 = scmp.eq.s32.totalorder %s15, 0
    %p125 = por %p123, %p124
    %p126 = scmp.ne.s32.totalorder %s112, %s113
    %p127 = scmp.eq.s32.totalorder %s16, 7
    %p128 = por %p126, %p127
    %p130 = scmp.ne.s32.totalorder %s113, %s129
    %p131 = scmp.eq.s32.totalorder %s16, 0
    %p132 = por %p130, %p131
    %p133 = scmp.le.s32.totalorder 1, %s10
    %p134 = scmp.lt.s32.totalorder %s10, 9
    %p135 = pnand %p133, %p134
    %p136 = pneg %p135
    // Predicated region
    $region9: #{tpu_custom_call.1} parent=5 // pred_check
      _
    $region10: #{tpu_custom_call.1} parent=5 // pred_check_branch
      %138 = sbr.rel (%p135) target = $region12
    $region11: #{tpu_custom_call.1} parent=5 // pred_region
      %s139 = ssub.s32 %s10, 1
      // Predicated region
      $region13: #{tpu_custom_call.1} parent=11 // pred_check
        %p140 = pneg %p57
      $region14: #{tpu_custom_call.1} parent=11 // pred_check_branch
        %142 = sbr.rel (%p140) target = $region16
      $region15: #{tpu_custom_call.1} parent=11 // pred_region
        _
      $region16: #{tpu_custom_call.1} parent=11 // pred_fallthru
        _
      // Predicated region
      $region17: #{tpu_custom_call.1} parent=11 // pred_check
        %p143 = pneg %p78
      $region18: #{tpu_custom_call.1} parent=11 // pred_check_branch
        %145 = sbr.rel (%p143) target = $region20
      $region19: #{tpu_custom_call.1} parent=11 // pred_region
        _
      $region20: #{tpu_custom_call.1} parent=11 // pred_fallthru
        _
      // Predicated region
      $region21: #{tpu_custom_call.1} parent=11 // pred_check
        %p146 = pneg %p99
      $region22: #{tpu_custom_call.1} parent=11 // pred_check_branch
        %148 = sbr.rel (%p146) target = $region24
      $region23: #{tpu_custom_call.1} parent=11 // pred_region
        _
      $region24: #{tpu_custom_call.1} parent=11 // pred_fallthru
        _
    $region12: #{tpu_custom_call.1} parent=5 // pred_fallthru
      _
    %p149 = scmp.lt.s32.totalorder %s10, 8
    // Predicated region
    $region25: #{tpu_custom_call.1} parent=5 // pred_check
      %p150 = pneg %p149
    $region26: #{tpu_custom_call.1} parent=5 // pred_check_branch
      %152 = sbr.rel (%p150) target = $region28
    $region27: #{tpu_custom_call.1} parent=5 // pred_region
      // Predicated region
      $region29: #{tpu_custom_call.1} parent=27 // pred_check
        %p153 = pneg %p30
      $region30: #{tpu_custom_call.1} parent=27 // pred_check_branch
        %155 = sbr.rel (%p153) target = $region32
      $region31: #{tpu_custom_call.1} parent=27 // pred_region
        %p156 = scmp.lt.s32.totalorder %s10, 7
        %s157 = scalar_select %p156, %s10, 7
        %s158 = smul.addr %s157, 3
        %s159 = smul.addr %s158, 8
        %s160 = scalar_lea.vmem %s0, %s159
      $region32: #{tpu_custom_call.1} parent=27 // pred_fallthru
        _
    $region28: #{tpu_custom_call.1} parent=5 // pred_fallthru
      _
    %p161 = scmp.le.s32.totalorder 1, %s10
    %p162 = scmp.lt.s32.totalorder %s10, 9
    %p163 = pnand %p161, %p162
    %p164 = pneg %p163
    // Predicated region
    $region33: #{tpu_custom_call.1} parent=5 // pred_check
      _
    $region34: #{tpu_custom_call.1} parent=5 // pred_check_branch
      %166 = sbr.rel (%p163) target = $region36
    $region35: #{tpu_custom_call.1} parent=5 // pred_region
      %s167 = ssub.s32 %s10, 1
      %p168 = scmp.lt.s32.totalorder %s15, 7
      %s169 = scalar_select %p168, %s15, 7
      %s170 = smul.addr %s169, 3
      %s171 = smul.addr %s170, 8
      %s172 = scalar_lea.vmem %s0, %s171
      %p173 = pneg %p36
      %p174 = pneg %p33
      %p175 = pneg %p57
      %p176 = pneg %p54
      %p177 = pneg %p78
      %p178 = pneg %p75
      %p179 = pneg %p99
      %p180 = pneg %p96
      %p181 = pneg %p125
      %p182 = pneg %p122
      %p183 = scmp.lt.s32.totalorder %s15, 7
      %s184 = scalar_select %p183, %s15, 7
      %s185 = smul.addr %s184, 3
      %s186 = smul.addr %s185, 8
      %s187 = scalar_lea.vmem %s4, %s186
      %p188 = scmp.lt.s32.totalorder %s15, 7
      %s189 = scalar_select %p188, %s15, 7
      %s190 = smul.addr %s189, 3
      %s191 = smul.addr %s190, 8
      %s192 = scalar_lea.vmem %s0, %s191
      %p193 = scmp.lt.s32.totalorder %s15, 7
      %s194 = scalar_select %p193, %s15, 7
      %s195 = smul.addr %s194, 3
      %s196 = smul.addr %s195, 8
      %s197 = scalar_lea.vmem %s4, %s196
      %v198 = vld [vmem:[%s192] sm:$0xff]
      %v199 = vld [vmem:[%s192 + $0x8] sm:$0xff]
      %v200 = vld [vmem:[%s192 + $0x10] sm:$0x3]
      %v201 = vld [vmem:[%s1] sm:$0xff]
      %v202 = vld [vmem:[%s1 + $0x8] sm:$0xff]
      %v203 = vld [vmem:[%s1 + $0x10] sm:$0xff]
      %v204 = vld [vmem:[%s1 + $0x18] sm:$0xff]
      %v205 = vld [vmem:[%s1 + $0x20] sm:$0xff]
      %v206 = vld [vmem:[%s1 + $0x28] sm:$0xff]
      %v207 = vld [vmem:[%s1 + $0x30] sm:$0xff]
      %v208 = vld [vmem:[%s1 + $0x38] sm:$0xff]
      %v209 = vld [vmem:[%s1 + $0x40] sm:$0xff]
      %v210 = vld [vmem:[%s1 + $0x48] sm:$0xff]
      %v211 = vld [vmem:[%s1 + $0x50] sm:$0xff]
      %v212 = vld [vmem:[%s1 + $0x58] sm:$0xff]
      %v213 = vld [vmem:[%s1 + $0x60] sm:$0xff]
      %v214 = vld [vmem:[%s1 + $0x68] sm:$0xff]
      %v215 = vld [vmem:[%s1 + $0x70] sm:$0xff]
      %v216 = vld [vmem:[%s1 + $0x78] sm:$0xff]
      %v217 = vld [vmem:[%s2] sm:$0xff]
      %v218 = vld [vmem:[%s2 + $0x8] sm:$0xff]
      %v219 = vld [vmem:[%s2 + $0x10] sm:$0xff]
      %v220 = vld [vmem:[%s2 + $0x18] sm:$0xff]
      %v221 = vld [vmem:[%s2 + $0x20] sm:$0xff]
      %v222 = vld [vmem:[%s2 + $0x28] sm:$0xff]
      %v223 = vld [vmem:[%s2 + $0x30] sm:$0xff]
      %v224 = vld [vmem:[%s2 + $0x38] sm:$0xff]
      %v225 = vld [vmem:[%s2 + $0x40] sm:$0xff]
      %v226 = vld [vmem:[%s2 + $0x48] sm:$0xff]
      %v227 = vld [vmem:[%s2 + $0x50] sm:$0xff]
      %v228 = vld [vmem:[%s2 + $0x58] sm:$0xff]
      %v229 = vld [vmem:[%s2 + $0x60] sm:$0xff]
      %v230 = vld [vmem:[%s2 + $0x68] sm:$0xff]
      %v231 = vld [vmem:[%s2 + $0x70] sm:$0xff]
      %v232 = vld [vmem:[%s2 + $0x78] sm:$0xff]
      %vm236 = vcmask 1046528
      %v237 = vrot.slane %v198, 1
      %v238 = vrot.slane %v199, 1
      %v239 = vsel %vm236, %v237, %v238
      %v240 = vrot.slane %v200, 1
      %v241 = vsel %vm236, %v238, %v240
      %vm242 = vcmask 523264
      %v243 = vsel %vm242, %v239, 0
      %v245 = vsel %vm242, %v241, 0
      %v247 = vsel %vm242, %v240, 0
      %v249 = vand.u32 %v218, 4294901760
      %250 = vmatprep.subr.mxu0 %v249
      %v251 = vand.u32 %v217, 4294901760
      %252 = vmatpush1.msra.mxu0 %v251
      %v253 = vand.u32 %v220, 4294901760
      %254 = vmatprep.subr.mxu0 %v253
      %v255 = vand.u32 %v219, 4294901760
      %256 = vmatpush1.msra.mxu0 %v255
      %v257 = vand.u32 %v222, 4294901760
      %258 = vmatprep.subr.mxu0 %v257
      %v259 = vand.u32 %v221, 4294901760
      %260 = vmatpush1.msra.mxu0 %v259
      %v261 = vand.u32 %v224, 4294901760
      %262 = vmatprep.subr.mxu0 %v261
      %v263 = vand.u32 %v223, 4294901760
      %264 = vmatpush1.msra.mxu0 %v263
      %v265 = vand.u32 %v226, 4294901760
      %266 = vmatprep.subr.mxu0 %v265
      %v267 = vand.u32 %v225, 4294901760
      %268 = vmatpush1.msra.mxu0 %v267
      %v269 = vand.u32 %v228, 4294901760
      %270 = vmatprep.subr.mxu0 %v269
      %v271 = vand.u32 %v227, 4294901760
      %272 = vmatpush1.msra.mxu0 %v271
      %v273 = vand.u32 %v230, 4294901760
      %274 = vmatprep.subr.mxu0 %v273
      %v275 = vand.u32 %v229, 4294901760
      %276 = vmatpush1.msra.mxu0 %v275
      %v277 = vand.u32 %v232, 4294901760
      %278 = vmatprep.subr.mxu0 %v277
      %v279 = vand.u32 %v231, 4294901760
      %280 = vmatpush1.msra.mxu0 %v279
      %281 = vmatprep.subr.mxu0 0.0
      %282 = vmatpush1.msra.mxu0 0.0
      %283 = vmatprep.subr.mxu0 0.0
      %284 = vmatpush1.msra.mxu0 0.0
      %285 = vmatprep.subr.mxu0 0.0
      %286 = vmatpush1.msra.mxu0 0.0
      %287 = vmatprep.subr.mxu0 0.0
      %288 = vmatpush1.msra.mxu0 0.0
      %289 = vmatprep.subr.mxu0 0.0
      %290 = vmatpush1.msra.mxu0 0.0
      %291 = vmatprep.subr.mxu0 0.0
      %292 = vmatpush1.msra.mxu0 0.0
      %293 = vmatprep.subr.mxu0 0.0
      %294 = vmatpush1.msra.mxu0 0.0
      %295 = vmatprep.subr.mxu0 0.0
      %296 = vmatpush1.msra.mxu0 0.0
      %297 = vmatprep.subr.mxu0 0.0
      %298 = vmatpush1.msra.mxu0 0.0
      %299 = vmatprep.subr.mxu0 0.0
      %300 = vmatpush1.msra.mxu0 0.0
      %301 = vmatprep.subr.mxu0 0.0
      %302 = vmatpush1.msra.mxu0 0.0
      %303 = vmatprep.subr.mxu0 0.0
      %304 = vmatpush1.msra.mxu0 0.0
      %305 = vmatprep.subr.mxu0 0.0
      %306 = vmatpush1.msra.mxu0 0.0
      %307 = vmatprep.subr.mxu0 0.0
      %308 = vmatpush1.msra.mxu0 0.0
      %309 = vmatprep.subr.mxu0 0.0
      %310 = vmatpush1.msra.mxu0 0.0
      %311 = vmatprep.subr.mxu0 0.0
      %312 = vmatpush1.msra.mxu0 0.0
      %313 = vmatprep.subr.mxu0 0.0
      %314 = vmatpush1.msra.mxu0 0.0
      %315 = vmatprep.subr.mxu0 0.0
      %316 = vmatpush1.msra.mxu0 0.0
      %317 = vmatprep.subr.mxu0 0.0
      %318 = vmatpush1.msra.mxu0 0.0
      %319 = vmatprep.subr.mxu0 0.0
      %320 = vmatpush1.msra.mxu0 0.0
      %321 = vmatprep.subr.mxu0 0.0
      %322 = vmatpush1.msra.mxu0 0.0
      %323 = vmatprep.subr.mxu0 0.0
      %324 = vmatpush1.msra.mxu0 0.0
      %325 = vmatprep.subr.mxu0 0.0
      %326 = vmatpush1.msra.mxu0 0.0
      %327 = vmatprep.subr.mxu0 0.0
      %328 = vmatpush1.msra.mxu0 0.0
      %329 = vmatprep.mubr.f32.mxu0 0.0
      %v330 = vand.u32 %v243, 4294901760
      %v331 = vsub.f32 %v243, %v330
      %v332 = vand.u32 %v331, 4294901760
      %v333 = vsub.f32 %v331, %v332
      %v334 = vand.u32 %v333, 4294901760
      %335 = vmatmul.mubr.f32.gmra.mrb[0].mxu0 %v334
      %v336 = vpop.f32.mrb[0].mxu0
      %v337 = vadd.f32 0.0, %v336
      %v338 = vpop.f32.mrb[0].mxu0
      %v339 = vadd.f32 0.0, %v338
      %340 = vmatprep.mubr.f32.mxu0 0.0
      %v341 = vand.u32 %v245, 4294901760
      %v342 = vsub.f32 %v245, %v341
      %v343 = vand.u32 %v342, 4294901760
      %v344 = vsub.f32 %v342, %v343
      %v345 = vand.u32 %v344, 4294901760
      %346 = vmatmul.mubr.f32.gmra.mrb[0].mxu0 %v345
      %v347 = vpop.f32.mrb[0].mxu0
      %v348 = vadd.f32 0.0, %v347
      %v349 = vpop.f32.mrb[0].mxu0
      %v350 = vadd.f32 0.0, %v349
      %351 = vmatprep.mubr.f32.mxu0 0.0
      %v352 = vand.u32 %v247, 4294901760
      %v353 = vsub.f32 %v247, %v352
      %v354 = vand.u32 %v353, 4294901760
      %v355 = vsub.f32 %v353, %v354
      %v356 = vand.u32 %v355, 4294901760
      %357 = vmatmul.mubr.f32.gmra.mrb[0].mxu0 %v356
      %v358 = vpop.f32.mrb[0].mxu0
      %v359 = vadd.f32 0.0, %v358
      %v360 = vpop.f32.mrb[0].mxu0
      %v361 = vadd.f32 0.0, %v360
      %362 = vdwg.mxu0
      %v363 = vand.u32 %v218, 4294901760
      %v364 = vsub.f32 %v218, %v363
      %v365 = vand.u32 %v364, 4294901760
      %v366 = vsub.f32 %v364, %v365
      %v367 = vand.u32 %v366, 4294901760
      %368 = vmatprep.subr.mxu0 %v367
      %v369 = vand.u32 %v217, 4294901760
      %v370 = vsub.f32 %v217, %v369
      %v371 = vand.u32 %v370, 4294901760
      %v372 = vsub.f32 %v370, %v371
      %v373 = vand.u32 %v372, 4294901760
      %374 = vmatpush1.msra.mxu0 %v373
      %v375 = vand.u32 %v220, 4294901760
      %v376 = vsub.f32 %v220, %v375
      %v377 = vand.u32 %v376, 4294901760
      %v378 = vsub.f32 %v376, %v377
      %v379 = vand.u32 %v378, 4294901760
      %380 = vmatprep.subr.mxu0 %v379
      %v381 = vand.u32 %v219, 4294901760
      %v382 = vsub.f32 %v219, %v381
      %v383 = vand.u32 %v382, 4294901760
      %v384 = vsub.f32 %v382, %v383
      %v385 = vand.u32 %v384, 4294901760
      %386 = vmatpush1.msra.mxu0 %v385
      %v387 = vand.u32 %v222, 4294901760
      %v388 = vsub.f32 %v222, %v387
      %v389 = vand.u32 %v388, 4294901760
      %v390 = vsub.f32 %v388, %v389
      %v391 = vand.u32 %v390, 4294901760
      %392 = vmatprep.subr.mxu0 %v391
      %v393 = vand.u32 %v221, 4294901760
      %v394 = vsub.f32 %v221, %v393
      %v395 = vand.u32 %v394, 4294901760
      %v396 = vsub.f32 %v394, %v395
      %v397 = vand.u32 %v396, 4294901760
      %398 = vmatpush1.msra.mxu0 %v397
      %v399 = vand.u32 %v224, 4294901760
      %v400 = vsub.f32 %v224, %v399
      %v401 = vand.u32 %v400, 4294901760
      %v402 = vsub.f32 %v400, %v401
      %v403 = vand.u32 %v402, 4294901760
      %404 = vmatprep.subr.mxu0 %v403
      %v405 = vand.u32 %v223, 4294901760
      %v406 = vsub.f32 %v223, %v405
      %v407 = vand.u32 %v406, 4294901760
      %v408 = vsub.f32 %v406, %v407
      %v409 = vand.u32 %v408, 4294901760
      %410 = vmatpush1.msra.mxu0 %v409
      %v411 = vand.u32 %v226, 4294901760
      %v412 = vsub.f32 %v226, %v411
      %v413 = vand.u32 %v412, 4294901760
      %v414 = vsub.f32 %v412, %v413
      %v415 = vand.u32 %v414, 4294901760
      %416 = vmatprep.subr.mxu0 %v415
      %v417 = vand.u32 %v225, 4294901760
      %v418 = vsub.f32 %v225, %v417
      %v419 = vand.u32 %v418, 4294901760
      %v420 = vsub.f32 %v418, %v419
      %v421 = vand.u32 %v420, 4294901760
      %422 = vmatpush1.msra.mxu0 %v421
      %v423 = vand.u32 %v228, 4294901760
      %v424 = vsub.f32 %v228, %v423
      %v425 = vand.u32 %v424, 4294901760
      %v426 = vsub.f32 %v424, %v425
      %v427 = vand.u32 %v426, 4294901760
      %428 = vmatprep.subr.mxu0 %v427
      %v429 = vand.u32 %v227, 4294901760
      %v430 = vsub.f32 %v227, %v429
      %v431 = vand.u32 %v430, 4294901760
      %v432 = vsub.f32 %v430, %v431
      %v433 = vand.u32 %v432, 4294901760
      %434 = vmatpush1.msra.mxu0 %v433
      %v435 = vand.u32 %v230, 4294901760
      %v436 = vsub.f32 %v230, %v435
      %v437 = vand.u32 %v436, 4294901760
      %v438 = vsub.f32 %v436, %v437
      %v439 = vand.u32 %v438, 4294901760
      %440 = vmatprep.subr.mxu0 %v439
      %v441 = vand.u32 %v229, 4294901760
      %v442 = vsub.f32 %v229, %v441
      %v443 = vand.u32 %v442, 4294901760
      %v444 = vsub.f32 %v442, %v443
      %v445 = vand.u32 %v444, 4294901760
      %446 = vmatpush1.msra.mxu0 %v445
      %v447 = vand.u32 %v232, 4294901760
      %v448 = vsub.f32 %v232, %v447
      %v449 = vand.u32 %v448, 4294901760
      %v450 = vsub.f32 %v448, %v449
      %v451 = vand.u32 %v450, 4294901760
      %452 = vmatprep.subr.mxu0 %v451
      %v453 = vand.u32 %v231, 4294901760
      %v454 = vsub.f32 %v231, %v453
      %v455 = vand.u32 %v454, 4294901760
      %v456 = vsub.f32 %v454, %v455
      %v457 = vand.u32 %v456, 4294901760
      %458 = vmatpush1.msra.mxu0 %v457
      %459 = vmatprep.subr.mxu0 0.0
      %460 = vmatpush1.msra.mxu0 0.0
      %461 = vmatprep.subr.mxu0 0.0
      %462 = vmatpush1.msra.mxu0 0.0
      %463 = vmatprep.subr.mxu0 0.0
      %464 = vmatpush1.msra.mxu0 0.0
      %465 = vmatprep.subr.mxu0 0.0
      %466 = vmatpush1.msra.mxu0 0.0
      %467 = vmatprep.subr.mxu0 0.0
      %468 = vmatpush1.msra.mxu0 0.0
      %469 = vmatprep.subr.mxu0 0.0
      %470 = vmatpush1.msra.mxu0 0.0
      %471 = vmatprep.subr.mxu0 0.0
      %472 = vmatpush1.msra.mxu0 0.0
      %473 = vmatprep.subr.mxu0 0.0
      %474 = vmatpush1.msra.mxu0 0.0
      %475 = vmatprep.subr.mxu0 0.0
      %476 = vmatpush1.msra.mxu0 0.0
      %477 = vmatprep.subr.mxu0 0.0
      %478 = vmatpush1.msra.mxu0 0.0
      %479 = vmatprep.subr.mxu0 0.0
      %480 = vmatpush1.msra.mxu0 0.0
      %481 = vmatprep.subr.mxu0 0.0
      %482 = vmatpush1.msra.mxu0 0.0
      %483 = vmatprep.subr.mxu0 0.0
      %484 = vmatpush1.msra.mxu0 0.0
      %485 = vmatprep.subr.mxu0 0.0
      %486 = vmatpush1.msra.mxu0 0.0
      %487 = vmatprep.subr.mxu0 0.0
      %488 = vmatpush1.msra.mxu0 0.0
      %489 = vmatprep.subr.mxu0 0.0
      %490 = vmatpush1.msra.mxu0 0.0
      %491 = vmatprep.subr.mxu0 0.0
      %492 = vmatpush1.msra.mxu0 0.0
      %493 = vmatprep.subr.mxu0 0.0
      %494 = vmatpush1.msra.mxu0 0.0
      %495 = vmatprep.subr.mxu0 0.0
      %496 = vmatpush1.msra.mxu0 0.0
      %497 = vmatprep.subr.mxu0 0.0
      %498 = vmatpush1.msra.mxu0 0.0
      %499 = vmatprep.subr.mxu0 0.0
      %500 = vmatpush1.msra.mxu0 0.0
      %501 = vmatprep.subr.mxu0 0.0
      %502 = vmatpush1.msra.mxu0 0.0
      %503 = vmatprep.subr.mxu0 0.0
      %504 = vmatpush1.msra.mxu0 0.0
      %505 = vmatprep.subr.mxu0 0.0
      %506 = vmatpush1.msra.mxu0 0.0
      %507 = vmatprep.mubr.f32.mxu0 0.0
      %v508 = vand.u32 %v243, 4294901760
      %509 = vmatmul.mubr.f32.gmra.mrb[0].mxu0 %v508
      %v510 = vpop.f32.mrb[0].mxu0
      %v511 = vadd.f32 %v337, %v510
      %v512 = vpop.f32.mrb[0].mxu0
      %v513 = vadd.f32 %v339, %v512
      %514 = vmatprep.mubr.f32.mxu0 0.0
      %v515 = vand.u32 %v245, 4294901760
      %516 = vmatmul.mubr.f32.gmra.mrb[0].mxu0 %v515
      %v517 = vpop.f32.mrb[0].mxu0
      %v518 = vadd.f32 %v348, %v517
      %v519 = vpop.f32.mrb[0].mxu0
      %v520 = vadd.f32 %v350, %v519
      %521 = vmatprep.mubr.f32.mxu0 0.0
      %v522 = vand.u32 %v247, 4294901760
      %523 = vmatmul.mubr.f32.gmra.mrb[0].mxu0 %v522
      %v524 = vpop.f32.mrb[0].mxu0
      %v525 = vadd.f32 %v359, %v524
      %v526 = vpop.f32.mrb[0].mxu0
      %v527 = vadd.f32 %v361, %v526
      %528 = vdwg.mxu0
      %v529 = vand.u32 %v218, 4294901760
      %v530 = vsub.f32 %v218, %v529
      %531 = vmatprep.subr.mxu0 %v530
      %v532 = vand.u32 %v217, 4294901760
      %v533 = vsub.f32 %v217, %v532
      %534 = vmatpush1.msra.mxu0 %v533
      %v535 = vand.u32 %v220, 4294901760
      %v536 = vsub.f32 %v220, %v535
      %537 = vmatprep.subr.mxu0 %v536
      %v538 = vand.u32 %v219, 4294901760
      %v539 = vsub.f32 %v219, %v538
      %540 = vmatpush1.msra.mxu0 %v539
      %v541 = vand.u32 %v222, 4294901760
      %v542 = vsub.f32 %v222, %v541
      %543 = vmatprep.subr.mxu0 %v542
      %v544 = vand.u32 %v221, 4294901760
      %v545 = vsub.f32 %v221, %v544
      %546 = vmatpush1.msra.mxu0 %v545
      %v547 = vand.u32 %v224, 4294901760
      %v548 = vsub.f32 %v224, %v547
      %549 = vmatprep.subr.mxu0 %v548
      %v550 = vand.u32 %v223, 4294901760
      %v551 = vsub.f32 %v223, %v550
      %552 = vmatpush1.msra.mxu0 %v551
      %v553 = vand.u32 %v226, 4294901760
      %v554 = vsub.f32 %v226, %v553
      %555 = vmatprep.subr.mxu0 %v554
      %v556 = vand.u32 %v225, 4294901760
      %v557 = vsub.f32 %v225, %v556
      %558 = vmatpush1.msra.mxu0 %v557
      %v559 = vand.u32 %v228, 4294901760
      %v560 = vsub.f32 %v228, %v559
      %561 = vmatprep.subr.mxu0 %v560
      %v562 = vand.u32 %v227, 4294901760
      %v563 = vsub.f32 %v227, %v562
      %564 = vmatpush1.msra.mxu0 %v563
      %v565 = vand.u32 %v230, 4294901760
      %v566 = vsub.f32 %v230, %v565
      %567 = vmatprep.subr.mxu0 %v566
      %v568 = vand.u32 %v229, 4294901760
      %v569 = vsub.f32 %v229, %v568
      %570 = vmatpush1.msra.mxu0 %v569
      %v571 = vand.u32 %v232, 4294901760
      %v572 = vsub.f32 %v232, %v571
      %573 = vmatprep.subr.mxu0 %v572
      %v574 = vand.u32 %v231, 4294901760
      %v575 = vsub.f32 %v231, %v574
      %576 = vmatpush1.msra.mxu0 %v575
      %577 = vmatprep.subr.mxu0 0.0
      %578 = vmatpush1.msra.mxu0 0.0
      %579 = vmatprep.subr.mxu0 0.0
      %580 = vmatpush1.msra.mxu0 0.0
      %581 = vmatprep.subr.mxu0 0.0
      %582 = vmatpush1.msra.mxu0 0.0
      %583 = vmatprep.subr.mxu0 0.0
      %584 = vmatpush1.msra.mxu0 0.0
      %585 = vmatprep.subr.mxu0 0.0
      %586 = vmatpush1.msra.mxu0 0.0
      %587 = vmatprep.subr.mxu0 0.0
      %588 = vmatpush1.msra.mxu0 0.0
      %589 = vmatprep.subr.mxu0 0.0
      %590 = vmatpush1.msra.mxu0 0.0
      %591 = vmatprep.subr.mxu0 0.0
      %592 = vmatpush1.msra.mxu0 0.0
      %593 = vmatprep.subr.mxu0 0.0
      %594 = vmatpush1.msra.mxu0 0.0
      %595 = vmatprep.subr.mxu0 0.0
      %596 = vmatpush1.msra.mxu0 0.0
      %597 = vmatprep.subr.mxu0 0.0
      %598 = vmatpush1.msra.mxu0 0.0
      %599 = vmatprep.subr.mxu0 0.0
      %600 = vmatpush1.msra.mxu0 0.0
      %601 = vmatprep.subr.mxu0 0.0
      %602 = vmatpush1.msra.mxu0 0.0
      %603 = vmatprep.subr.mxu0 0.0
      %604 = vmatpush1.msra.mxu0 0.0
      %605 = vmatprep.subr.mxu0 0.0
      %606 = vmatpush1.msra.mxu0 0.0
      %607 = vmatprep.subr.mxu0 0.0
      %608 = vmatpush1.msra.mxu0 0.0
      %609 = vmatprep.subr.mxu0 0.0
      %610 = vmatpush1.msra.mxu0 0.0
      %611 = vmatprep.subr.mxu0 0.0
      %612 = vmatpush1.msra.mxu0 0.0
      %613 = vmatprep.subr.mxu0 0.0
      %614 = vmatpush1.msra.mxu0 0.0
      %615 = vmatprep.subr.mxu0 0.0
      %616 = vmatpush1.msra.mxu0 0.0
      %617 = vmatprep.subr.mxu0 0.0
      %618 = vmatpush1.msra.mxu0 0.0
      %619 = vmatprep.subr.mxu0 0.0
      %620 = vmatpush1.msra.mxu0 0.0
      %621 = vmatprep.subr.mxu0 0.0
      %622 = vmatpush1.msra.mxu0 0.0
      %623 = vmatprep.subr.mxu0 0.0
      %624 = vmatpush1.msra.mxu0 0.0
      %625 = vmatprep.mubr.f32.mxu0 0.0
      %v626 = vand.u32 %v243, 4294901760
      %v627 = vsub.f32 %v243, %v626
      %628 = vmatmul.mubr.f32.gmra.mrb[0].mxu0 %v627
      %v629 = vpop.f32.mrb[0].mxu0
      %v630 = vadd.f32 %v511, %v629
      %v631 = vpop.f32.mrb[0].mxu0
      %v632 = vadd.f32 %v513, %v631
      %633 = vmatprep.mubr.f32.mxu0 0.0
      %v634 = vand.u32 %v245, 4294901760
      %v635 = vsub.f32 %v245, %v634
      %636 = vmatmul.mubr.f32.gmra.mrb[0].mxu0 %v635
      %v637 = vpop.f32.mrb[0].mxu0
      %v638 = vadd.f32 %v518, %v637
      %v639 = vpop.f32.mrb[0].mxu0
      %v640 = vadd.f32 %v520, %v639
      %641 = vmatprep.mubr.f32.mxu0 0.0
      %v642 = vand.u32 %v247, 4294901760
      %v643 = vsub.f32 %v247, %v642
      %644 = vmatmul.mubr.f32.gmra.mrb[0].mxu0 %v643
      %v645 = vpop.f32.mrb[0].mxu0
      %v646 = vadd.f32 %v525, %v645
      %v647 = vpop.f32.mrb[0].mxu0
      %v648 = vadd.f32 %v527, %v647
      %649 = vdwg.mxu0
      %v650 = vand.u32 %v218, 4294901760
      %651 = vmatprep.subr.mxu0 %v650
      %v652 = vand.u32 %v217, 4294901760
      %653 = vmatpush1.msra.mxu0 %v652
      %v654 = vand.u32 %v220, 4294901760
      %655 = vmatprep.subr.mxu0 %v654
      %v656 = vand.u32 %v219, 4294901760
      %657 = vmatpush1.msra.mxu0 %v656
      %v658 = vand.u32 %v222, 4294901760
      %659 = vmatprep.subr.mxu0 %v658
      %v660 = vand.u32 %v221, 4294901760
      %661 = vmatpush1.msra.mxu0 %v660
      %v662 = vand.u32 %v224, 4294901760
      %663 = vmatprep.subr.mxu0 %v662
      %v664 = vand.u32 %v223, 4294901760
      %665 = vmatpush1.msra.mxu0 %v664
      %v666 = vand.u32 %v226, 4294901760
      %667 = vmatprep.subr.mxu0 %v666
      %v668 = vand.u32 %v225, 4294901760
      %669 = vmatpush1.msra.mxu0 %v668
      %v670 = vand.u32 %v228, 4294901760
      %671 = vmatprep.subr.mxu0 %v670
      %v672 = vand.u32 %v227, 4294901760
      %673 = vmatpush1.msra.mxu0 %v672
      %v674 = vand.u32 %v230, 4294901760
      %675 = vmatprep.subr.mxu0 %v674
      %v676 = vand.u32 %v229, 4294901760
      %677 = vmatpush1.msra.mxu0 %v676
      %v678 = vand.u32 %v232, 4294901760
      %679 = vmatprep.subr.mxu0 %v678
      %v680 = vand.u32 %v231, 4294901760
      %681 = vmatpush1.msra.mxu0 %v680
      %682 = vmatprep.subr.mxu0 0.0
      %683 = vmatpush1.msra.mxu0 0.0
      %684 = vmatprep.subr.mxu0 0.0
      %685 = vmatpush1.msra.mxu0 0.0
      %686 = vmatprep.subr.mxu0 0.0
      %687 = vmatpush1.msra.mxu0 0.0
      %688 = vmatprep.subr.mxu0 0.0
      %689 = vmatpush1.msra.mxu0 0.0
      %690 = vmatprep.subr.mxu0 0.0
      %691 = vmatpush1.msra.mxu0 0.0
      %692 = vmatprep.subr.mxu0 0.0
      %693 = vmatpush1.msra.mxu0 0.0
      %694 = vmatprep.subr.mxu0 0.0
      %695 = vmatpush1.msra.mxu0 0.0
      %696 = vmatprep.subr.mxu0 0.0
      %697 = vmatpush1.msra.mxu0 0.0
      %698 = vmatprep.subr.mxu0 0.0
      %699 = vmatpush1.msra.mxu0 0.0
      %700 = vmatprep.subr.mxu0 0.0
      %701 = vmatpush1.msra.mxu0 0.0
      %702 = vmatprep.subr.mxu0 0.0
      %703 = vmatpush1.msra.mxu0 0.0
      %704 = vmatprep.subr.mxu0 0.0
      %705 = vmatpush1.msra.mxu0 0.0
      %706 = vmatprep.subr.mxu0 0.0
      %707 = vmatpush1.msra.mxu0 0.0
      %708 = vmatprep.subr.mxu0 0.0
      %709 = vmatpush1.msra.mxu0 0.0
      %710 = vmatprep.subr.mxu0 0.0
      %711 = vmatpush1.msra.mxu0 0.0
      %712 = vmatprep.subr.mxu0 0.0
      %713 = vmatpush1.msra.mxu0 0.0
      %714 = vmatprep.subr.mxu0 0.0
      %715 = vmatpush1.msra.mxu0 0.0
      %716 = vmatprep.subr.mxu0 0.0
      %717 = vmatpush1.msra.mxu0 0.0
      %718 = vmatprep.subr.mxu0 0.0
      %719 = vmatpush1.msra.mxu0 0.0
      %720 = vmatprep.subr.mxu0 0.0
      %721 = vmatpush1.msra.mxu0 0.0
      %722 = vmatprep.subr.mxu0 0.0
      %723 = vmatpush1.msra.mxu0 0.0
      %724 = vmatprep.subr.mxu0 0.0
      %725 = vmatpush1.msra.mxu0 0.0
      %726 = vmatprep.subr.mxu0 0.0
      %727 = vmatpush1.msra.mxu0 0.0
      %728 = vmatprep.subr.mxu0 0.0
      %729 = vmatpush1.msra.mxu0 0.0
      %730 = vmatprep.mubr.f32.mxu0 0.0
      %v731 = vand.u32 %v243, 4294901760
      %v732 = vsub.f32 %v243, %v731
      %v733 = vand.u32 %v732, 4294901760
      %734 = vmatmul.mubr.f32.gmra.mrb[0].mxu0 %v733
      %v735 = vpop.f32.mrb[0].mxu0
      %v736 = vadd.f32 %v630, %v735
      %v737 = vpop.f32.mrb[0].mxu0
      %v738 = vadd.f32 %v632, %v737
      %739 = vmatprep.mubr.f32.mxu0 0.0
      %v740 = vand.u32 %v245, 4294901760
      %v741 = vsub.f32 %v245, %v740
      %v742 = vand.u32 %v741, 4294901760
      %743 = vmatmul.mubr.f32.gmra.mrb[0].mxu0 %v742
      %v744 = vpop.f32.mrb[0].mxu0
      %v745 = vadd.f32 %v638, %v744
      %v746 = vpop.f32.mrb[0].mxu0
      %v747 = vadd.f32 %v640, %v746
      %748 = vmatprep.mubr.f32.mxu0 0.0
      %v749 = vand.u32 %v247, 4294901760
      %v750 = vsub.f32 %v247, %v749
      %v751 = vand.u32 %v750, 4294901760
      %752 = vmatmul.mubr.f32.gmra.mrb[0].mxu0 %v751
      %v753 = vpop.f32.mrb[0].mxu0
      %v754 = vadd.f32 %v646, %v753
      %v755 = vpop.f32.mrb[0].mxu0
      %v756 = vadd.f32 %v648, %v755
      %757 = vdwg.mxu0
      %v758 = vand.u32 %v218, 4294901760
      %v759 = vsub.f32 %v218, %v758
      %v760 = vand.u32 %v759, 4294901760
      %761 = vmatprep.subr.mxu0 %v760
      %v762 = vand.u32 %v217, 4294901760
      %v763 = vsub.f32 %v217, %v762
      %v764 = vand.u32 %v763, 4294901760
      %765 = vmatpush1.msra.mxu0 %v764
      %v766 = vand.u32 %v220, 4294901760
      %v767 = vsub.f32 %v220, %v766
      %v768 = vand.u32 %v767, 4294901760
      %769 = vmatprep.subr.mxu0 %v768
      %v770 = vand.u32 %v219, 4294901760
      %v771 = vsub.f32 %v219, %v770
      %v772 = vand.u32 %v771, 4294901760
      %773 = vmatpush1.msra.mxu0 %v772
      %v774 = vand.u32 %v222, 4294901760
      %v775 = vsub.f32 %v222, %v774
      %v776 = vand.u32 %v775, 4294901760
      %777 = vmatprep.subr.mxu0 %v776
      %v778 = vand.u32 %v221, 4294901760
      %v779 = vsub.f32 %v221, %v778
      %v780 = vand.u32 %v779, 4294901760
      %781 = vmatpush1.msra.mxu0 %v780
      %v782 = vand.u32 %v224, 4294901760
      %v783 = vsub.f32 %v224, %v782
      %v784 = vand.u32 %v783, 4294901760
      %785 = vmatprep.subr.mxu0 %v784
      %v786 = vand.u32 %v223, 4294901760
      %v787 = vsub.f32 %v223, %v786
      %v788 = vand.u32 %v787, 4294901760
      %789 = vmatpush1.msra.mxu0 %v788
      %v790 = vand.u32 %v226, 4294901760
      %v791 = vsub.f32 %v226, %v790
      %v792 = vand.u32 %v791, 4294901760
      %793 = vmatprep.subr.mxu0 %v792
      %v794 = vand.u32 %v225, 4294901760
      %v795 = vsub.f32 %v225, %v794
      %v796 = vand.u32 %v795, 4294901760
      %797 = vmatpush1.msra.mxu0 %v796
      %v798 = vand.u32 %v228, 4294901760
      %v799 = vsub.f32 %v228, %v798
      %v800 = vand.u32 %v799, 4294901760
      %801 = vmatprep.subr.mxu0 %v800
      %v802 = vand.u32 %v227, 4294901760
      %v803 = vsub.f32 %v227, %v802
      %v804 = vand.u32 %v803, 4294901760
      %805 = vmatpush1.msra.mxu0 %v804
      %v806 = vand.u32 %v230, 4294901760
      %v807 = vsub.f32 %v230, %v806
      %v808 = vand.u32 %v807, 4294901760
      %809 = vmatprep.subr.mxu0 %v808
      %v810 = vand.u32 %v229, 4294901760
      %v811 = vsub.f32 %v229, %v810
      %v812 = vand.u32 %v811, 4294901760
      %813 = vmatpush1.msra.mxu0 %v812
      %v814 = vand.u32 %v232, 4294901760
      %v815 = vsub.f32 %v232, %v814
      %v816 = vand.u32 %v815, 4294901760
      %817 = vmatprep.subr.mxu0 %v816
      %v818 = vand.u32 %v231, 4294901760
      %v819 = vsub.f32 %v231, %v818
      %v820 = vand.u32 %v819, 4294901760
      %821 = vmatpush1.msra.mxu0 %v820
      %822 = vmatprep.subr.mxu0 0.0
      %823 = vmatpush1.msra.mxu0 0.0
      %824 = vmatprep.subr.mxu0 0.0
      %825 = vmatpush1.msra.mxu0 0.0
      %826 = vmatprep.subr.mxu0 0.0
      %827 = vmatpush1.msra.mxu0 0.0
      %828 = vmatprep.subr.mxu0 0.0
      %829 = vmatpush1.msra.mxu0 0.0
      %830 = vmatprep.subr.mxu0 0.0
      %831 = vmatpush1.msra.mxu0 0.0
      %832 = vmatprep.subr.mxu0 0.0
      %833 = vmatpush1.msra.mxu0 0.0
      %834 = vmatprep.subr.mxu0 0.0
      %835 = vmatpush1.msra.mxu0 0.0
      %836 = vmatprep.subr.mxu0 0.0
      %837 = vmatpush1.msra.mxu0 0.0
      %838 = vmatprep.subr.mxu0 0.0
      %839 = vmatpush1.msra.mxu0 0.0
      %840 = vmatprep.subr.mxu0 0.0
      %841 = vmatpush1.msra.mxu0 0.0
      %842 = vmatprep.subr.mxu0 0.0
      %843 = vmatpush1.msra.mxu0 0.0
      %844 = vmatprep.subr.mxu0 0.0
      %845 = vmatpush1.msra.mxu0 0.0
      %846 = vmatprep.subr.mxu0 0.0
      %847 = vmatpush1.msra.mxu0 0.0
      %848 = vmatprep.subr.mxu0 0.0
      %849 = vmatpush1.msra.mxu0 0.0
      %850 = vmatprep.subr.mxu0 0.0
      %851 = vmatpush1.msra.mxu0 0.0
      %852 = vmatprep.subr.mxu0 0.0
      %853 = vmatpush1.msra.mxu0 0.0
      %854 = vmatprep.subr.mxu0 0.0
      %855 = vmatpush1.msra.mxu0 0.0
      %856 = vmatprep.subr.mxu0 0.0
      %857 = vmatpush1.msra.mxu0 0.0
      %858 = vmatprep.subr.mxu0 0.0
      %859 = vmatpush1.msra.mxu0 0.0
      %860 = vmatprep.subr.mxu0 0.0
      %861 = vmatpush1.msra.mxu0 0.0
      %862 = vmatprep.subr.mxu0 0.0
      %863 = vmatpush1.msra.mxu0 0.0
      %864 = vmatprep.subr.mxu0 0.0
      %865 = vmatpush1.msra.mxu0 0.0
      %866 = vmatprep.subr.mxu0 0.0
      %867 = vmatpush1.msra.mxu0 0.0
      %868 = vmatprep.subr.mxu0 0.0
      %869 = vmatpush1.msra.mxu0 0.0
      %870 = vmatprep.mubr.f32.mxu0 0.0
      %v871 = vand.u32 %v243, 4294901760
      %872 = vmatmul.mubr.f32.gmra.mrb[0].mxu0 %v871
      %v873 = vpop.f32.mrb[0].mxu0
      %v874 = vadd.f32 %v736, %v873
      %v875 = vpop.f32.mrb[0].mxu0
      %v876 = vadd.f32 %v738, %v875
      %877 = vmatprep.mubr.f32.mxu0 0.0
      %v878 = vand.u32 %v245, 4294901760
      %879 = vmatmul.mubr.f32.gmra.mrb[0].mxu0 %v878
      %v880 = vpop.f32.mrb[0].mxu0
      %v881 = vadd.f32 %v745, %v880
      %v882 = vpop.f32.mrb[0].mxu0
      %v883 = vadd.f32 %v747, %v882
      %884 = vmatprep.mubr.f32.mxu0 0.0
      %v885 = vand.u32 %v247, 4294901760
      %886 = vmatmul.mubr.f32.gmra.mrb[0].mxu0 %v885
      %v887 = vpop.f32.mrb[0].mxu0
      %v888 = vadd.f32 %v754, %v887
      %v889 = vpop.f32.mrb[0].mxu0
      %v890 = vadd.f32 %v756, %v889
      %891 = vdwg.mxu0
      %v892 = vand.u32 %v218, 4294901760
      %893 = vmatprep.subr.mxu0 %v892
      %v894 = vand.u32 %v217, 4294901760
      %895 = vmatpush1.msra.mxu0 %v894
      %v896 = vand.u32 %v220, 4294901760
      %897 = vmatprep.subr.mxu0 %v896
      %v898 = vand.u32 %v219, 4294901760
      %899 = vmatpush1.msra.mxu0 %v898
      %v900 = vand.u32 %v222, 4294901760
      %901 = vmatprep.subr.mxu0 %v900
      %v902 = vand.u32 %v221, 4294901760
      %903 = vmatpush1.msra.mxu0 %v902
      %v904 = vand.u32 %v224, 4294901760
      %905 = vmatprep.subr.mxu0 %v904
      %v906 = vand.u32 %v223, 4294901760
      %907 = vmatpush1.msra.mxu0 %v906
      %v908 = vand.u32 %v226, 4294901760
      %909 = vmatprep.subr.mxu0 %v908
      %v910 = vand.u32 %v225, 4294901760
      %911 = vmatpush1.msra.mxu0 %v910
      %v912 = vand.u32 %v228, 4294901760
      %913 = vmatprep.subr.mxu0 %v912
      %v914 = vand.u32 %v227, 4294901760
      %915 = vmatpush1.msra.mxu0 %v914
      %v916 = vand.u32 %v230, 4294901760
      %917 = vmatprep.subr.mxu0 %v916
      %v918 = vand.u32 %v229, 4294901760
      %919 = vmatpush1.msra.mxu0 %v918
      %v920 = vand.u32 %v232, 4294901760
      %921 = vmatprep.subr.mxu0 %v920
      %v922 = vand.u32 %v231, 4294901760
      %923 = vmatpush1.msra.mxu0 %v922
      %924 = vmatprep.subr.mxu0 0.0
      %925 = vmatpush1.msra.mxu0 0.0
      %926 = vmatprep.subr.mxu0 0.0
      %927 = vmatpush1.msra.mxu0 0.0
      %928 = vmatprep.subr.mxu0 0.0
      %929 = vmatpush1.msra.mxu0 0.0
      %930 = vmatprep.subr.mxu0 0.0
      %931 = vmatpush1.msra.mxu0 0.0
      %932 = vmatprep.subr.mxu0 0.0
      %933 = vmatpush1.msra.mxu0 0.0
      %934 = vmatprep.subr.mxu0 0.0
      %935 = vmatpush1.msra.mxu0 0.0
      %936 = vmatprep.subr.mxu0 0.0
      %937 = vmatpush1.msra.mxu0 0.0
      %938 = vmatprep.subr.mxu0 0.0
      %939 = vmatpush1.msra.mxu0 0.0
      %940 = vmatprep.subr.mxu0 0.0
      %941 = vmatpush1.msra.mxu0 0.0
      %942 = vmatprep.subr.mxu0 0.0
      %943 = vmatpush1.msra.mxu0 0.0
      %944 = vmatprep.subr.mxu0 0.0
      %945 = vmatpush1.msra.mxu0 0.0
      %946 = vmatprep.subr.mxu0 0.0
      %947 = vmatpush1.msra.mxu0 0.0
      %948 = vmatprep.subr.mxu0 0.0
      %949 = vmatpush1.msra.mxu0 0.0
      %950 = vmatprep.subr.mxu0 0.0
      %951 = vmatpush1.msra.mxu0 0.0
      %952 = vmatprep.subr.mxu0 0.0
      %953 = vmatpush1.msra.mxu0 0.0
      %954 = vmatprep.subr.mxu0 0.0
      %955 = vmatpush1.msra.mxu0 0.0
      %956 = vmatprep.subr.mxu0 0.0
      %957 = vmatpush1.msra.mxu0 0.0
      %958 = vmatprep.subr.mxu0 0.0
      %959 = vmatpush1.msra.mxu0 0.0
      %960 = vmatprep.subr.mxu0 0.0
      %961 = vmatpush1.msra.mxu0 0.0
      %962 = vmatprep.subr.mxu0 0.0
      %963 = vmatpush1.msra.mxu0 0.0
      %964 = vmatprep.subr.mxu0 0.0
      %965 = vmatpush1.msra.mxu0 0.0
      %966 = vmatprep.subr.mxu0 0.0
      %967 = vmatpush1.msra.mxu0 0.0
      %968 = vmatprep.subr.mxu0 0.0
      %969 = vmatpush1.msra.mxu0 0.0
      %970 = vmatprep.subr.mxu0 0.0
      %971 = vmatpush1.msra.mxu0 0.0
      %972 = vmatprep.mubr.f32.mxu0 0.0
      %v973 = vand.u32 %v243, 4294901760
      %974 = vmatmul.mubr.f32.gmra.mrb[0].mxu0 %v973
      %v975 = vpop.f32.mrb[0].mxu0
      %v976 = vadd.f32 %v874, %v975
      %v977 = vpop.f32.mrb[0].mxu0
      %v978 = vadd.f32 %v876, %v977
      %979 = vmatprep.mubr.f32.mxu0 0.0
      %v980 = vand.u32 %v245, 4294901760
      %981 = vmatmul.mubr.f32.gmra.mrb[0].mxu0 %v980
      %v982 = vpop.f32.mrb[0].mxu0
      %v983 = vadd.f32 %v881, %v982
      %v984 = vpop.f32.mrb[0].mxu0
      %v985 = vadd.f32 %v883, %v984
      %986 = vmatprep.mubr.f32.mxu0 0.0
      %v987 = vand.u32 %v247, 4294901760
      %988 = vmatmul.mubr.f32.gmra.mrb[0].mxu0 %v987
      %v989 = vpop.f32.mrb[0].mxu0
      %v990 = vadd.f32 %v888, %v989
      %v991 = vpop.f32.mrb[0].mxu0
      %v992 = vadd.f32 %v890, %v991
      %993 = vdwg.mxu0
      %v994 = vsel %vm242, %v198, 0
      %v996 = vsel %vm242, %v199, 0
      %v998 = vsel %vm242, %v200, 0
      %v1000 = vand.u32 %v202, 4294901760
      %1001 = vmatprep.subr.mxu0 %v1000
      %v1002 = vand.u32 %v201, 4294901760
      %1003 = vmatpush1.msra.mxu0 %v1002
      %v1004 = vand.u32 %v204, 4294901760
      %1005 = vmatprep.subr.mxu0 %v1004
      %v1006 = vand.u32 %v203, 4294901760
      %1007 = vmatpush1.msra.mxu0 %v1006
      %v1008 = vand.u32 %v206, 4294901760
      %1009 = vmatprep.subr.mxu0 %v1008
      %v1010 = vand.u32 %v205, 4294901760
      %1011 = vmatpush1.msra.mxu0 %v1010
      %v1012 = vand.u32 %v208, 4294901760
      %1013 = vmatprep.subr.mxu0 %v1012
      %v1014 = vand.u32 %v207, 4294901760
      %1015 = vmatpush1.msra.mxu0 %v1014
      %v1016 = vand.u32 %v210, 4294901760
      %1017 = vmatprep.subr.mxu0 %v1016
      %v1018 = vand.u32 %v209, 4294901760
      %1019 = vmatpush1.msra.mxu0 %v1018
      %v1020 = vand.u32 %v212, 4294901760
      %1021 = vmatprep.subr.mxu0 %v1020
      %v1022 = vand.u32 %v211, 4294901760
      %1023 = vmatpush1.msra.mxu0 %v1022
      %v1024 = vand.u32 %v214, 4294901760
      %1025 = vmatprep.subr.mxu0 %v1024
      %v1026 = vand.u32 %v213, 4294901760
      %1027 = vmatpush1.msra.mxu0 %v1026
      %v1028 = vand.u32 %v216, 4294901760
      %1029 = vmatprep.subr.mxu0 %v1028
      %v1030 = vand.u32 %v215, 4294901760
      %1031 = vmatpush1.msra.mxu0 %v1030
      %1032 = vmatprep.subr.mxu0 0.0
      %1033 = vmatpush1.msra.mxu0 0.0
      %1034 = vmatprep.subr.mxu0 0.0
      %1035 = vmatpush1.msra.mxu0 0.0
      %1036 = vmatprep.subr.mxu0 0.0
      %1037 = vmatpush1.msra.mxu0 0.0
      %1038 = vmatprep.subr.mxu0 0.0
      %1039 = vmatpush1.msra.mxu0 0.0
      %1040 = vmatprep.subr.mxu0 0.0
      %1041 = vmatpush1.msra.mxu0 0.0
      %1042 = vmatprep.subr.mxu0 0.0
      %1043 = vmatpush1.msra.mxu0 0.0
      %1044 = vmatprep.subr.mxu0 0.0
      %1045 = vmatpush1.msra.mxu0 0.0
      %1046 = vmatprep.subr.mxu0 0.0
      %1047 = vmatpush1.msra.mxu0 0.0
      %1048 = vmatprep.subr.mxu0 0.0
      %1049 = vmatpush1.msra.mxu0 0.0
      %1050 = vmatprep.subr.mxu0 0.0
      %1051 = vmatpush1.msra.mxu0 0.0
      %1052 = vmatprep.subr.mxu0 0.0
      %1053 = vmatpush1.msra.mxu0 0.0
      %1054 = vmatprep.subr.mxu0 0.0
      %1055 = vmatpush1.msra.mxu0 0.0
      %1056 = vmatprep.subr.mxu0 0.0
      %1057 = vmatpush1.msra.mxu0 0.0
      %1058 = vmatprep.subr.mxu0 0.0
      %1059 = vmatpush1.msra.mxu0 0.0
      %1060 = vmatprep.subr.mxu0 0.0
      %1061 = vmatpush1.msra.mxu0 0.0
      %1062 = vmatprep.subr.mxu0 0.0
      %1063 = vmatpush1.msra.mxu0 0.0
      %1064 = vmatprep.subr.mxu0 0.0
      %1065 = vmatpush1.msra.mxu0 0.0
      %1066 = vmatprep.subr.mxu0 0.0
      %1067 = vmatpush1.msra.mxu0 0.0
      %1068 = vmatprep.subr.mxu0 0.0
      %1069 = vmatpush1.msra.mxu0 0.0
      %1070 = vmatprep.subr.mxu0 0.0
      %1071 = vmatpush1.msra.mxu0 0.0
      %1072 = vmatprep.subr.mxu0 0.0
      %1073 = vmatpush1.msra.mxu0 0.0
      %1074 = vmatprep.subr.mxu0 0.0
      %1075 = vmatpush1.msra.mxu0 0.0
      %1076 = vmatprep.subr.mxu0 0.0
      %1077 = vmatpush1.msra.mxu0 0.0
      %1078 = vmatprep.subr.mxu0 0.0
      %1079 = vmatpush1.msra.mxu0 0.0
      %1080 = vmatprep.mubr.f32.mxu0 0.0
      %v1081 = vand.u32 %v994, 4294901760
      %v1082 = vsub.f32 %v994, %v1081
      %v1083 = vand.u32 %v1082, 4294901760
      %v1084 = vsub.f32 %v1082, %v1083
      %v1085 = vand.u32 %v1084, 4294901760
      %1086 = vmatmul.mubr.f32.gmra.mrb[0].mxu0 %v1085
      %v1087 = vpop.f32.mrb[0].mxu0
      %v1088 = vadd.f32 %v976, %v1087
      %v1089 = vpop.f32.mrb[0].mxu0
      %v1090 = vadd.f32 %v978, %v1089
      %1091 = vmatprep.mubr.f32.mxu0 0.0
      %v1092 = vand.u32 %v996, 4294901760
      %v1093 = vsub.f32 %v996, %v1092
      %v1094 = vand.u32 %v1093, 4294901760
      %v1095 = vsub.f32 %v1093, %v1094
      %v1096 = vand.u32 %v1095, 4294901760
      %1097 = vmatmul.mubr.f32.gmra.mrb[0].mxu0 %v1096
      %v1098 = vpop.f32.mrb[0].mxu0
      %v1099 = vadd.f32 %v983, %v1098
      %v1100 = vpop.f32.mrb[0].mxu0
      %v1101 = vadd.f32 %v985, %v1100
      %1102 = vmatprep.mubr.f32.mxu0 0.0
      %v1103 = vand.u32 %v998, 4294901760
      %v1104 = vsub.f32 %v998, %v1103
      %v1105 = vand.u32 %v1104, 4294901760
      %v1106 = vsub.f32 %v1104, %v1105
      %v1107 = vand.u32 %v1106, 4294901760
      %1108 = vmatmul.mubr.f32.gmra.mrb[0].mxu0 %v1107
      %v1109 = vpop.f32.mrb[0].mxu0
      %v1110 = vadd.f32 %v990, %v1109
      %v1111 = vpop.f32.mrb[0].mxu0
      %v1112 = vadd.f32 %v992, %v1111
      %1113 = vdwg.mxu0
      %v1114 = vand.u32 %v202, 4294901760
      %v1115 = vsub.f32 %v202, %v1114
      %v1116 = vand.u32 %v1115, 4294901760
      %v1117 = vsub.f32 %v1115, %v1116
      %v1118 = vand.u32 %v1117, 4294901760
      %1119 = vmatprep.subr.mxu0 %v1118
      %v1120 = vand.u32 %v201, 4294901760
      %v1121 = vsub.f32 %v201, %v1120
      %v1122 = vand.u32 %v1121, 4294901760
      %v1123 = vsub.f32 %v1121, %v1122
      %v1124 = vand.u32 %v1123, 4294901760
      %1125 = vmatpush1.msra.mxu0 %v1124
      %v1126 = vand.u32 %v204, 4294901760
      %v1127 = vsub.f32 %v204, %v1126
      %v1128 = vand.u32 %v1127, 4294901760
      %v1129 = vsub.f32 %v1127, %v1128
      %v1130 = vand.u32 %v1129, 4294901760
      %1131 = vmatprep.subr.mxu0 %v1130
      %v1132 = vand.u32 %v203, 4294901760
      %v1133 = vsub.f32 %v203, %v1132
      %v1134 = vand.u32 %v1133, 4294901760
      %v1135 = vsub.f32 %v1133, %v1134
      %v1136 = vand.u32 %v1135, 4294901760
      %1137 = vmatpush1.msra.mxu0 %v1136
      %v1138 = vand.u32 %v206, 4294901760
      %v1139 = vsub.f32 %v206, %v1138
      %v1140 = vand.u32 %v1139, 4294901760
      %v1141 = vsub.f32 %v1139, %v1140
      %v1142 = vand.u32 %v1141, 4294901760
      %1143 = vmatprep.subr.mxu0 %v1142
      %v1144 = vand.u32 %v205, 4294901760
      %v1145 = vsub.f32 %v205, %v1144
      %v1146 = vand.u32 %v1145, 4294901760
      %v1147 = vsub.f32 %v1145, %v1146
      %v1148 = vand.u32 %v1147, 4294901760
      %1149 = vmatpush1.msra.mxu0 %v1148
      %v1150 = vand.u32 %v208, 4294901760
      %v1151 = vsub.f32 %v208, %v1150
      %v1152 = vand.u32 %v1151, 4294901760
      %v1153 = vsub.f32 %v1151, %v1152
      %v1154 = vand.u32 %v1153, 4294901760
      %1155 = vmatprep.subr.mxu0 %v1154
      %v1156 = vand.u32 %v207, 4294901760
      %v1157 = vsub.f32 %v207, %v1156
      %v1158 = vand.u32 %v1157, 4294901760
      %v1159 = vsub.f32 %v1157, %v1158
      %v1160 = vand.u32 %v1159, 4294901760
      %1161 = vmatpush1.msra.mxu0 %v1160
      %v1162 = vand.u32 %v210, 4294901760
      %v1163 = vsub.f32 %v210, %v1162
      %v1164 = vand.u32 %v1163, 4294901760
      %v1165 = vsub.f32 %v1163, %v1164
      %v1166 = vand.u32 %v1165, 4294901760
      %1167 = vmatprep.subr.mxu0 %v1166
      %v1168 = vand.u32 %v209, 4294901760
      %v1169 = vsub.f32 %v209, %v1168
      %v1170 = vand.u32 %v1169, 4294901760
      %v1171 = vsub.f32 %v1169, %v1170
      %v1172 = vand.u32 %v1171, 4294901760
      %1173 = vmatpush1.msra.mxu0 %v1172
      %v1174 = vand.u32 %v212, 4294901760
      %v1175 = vsub.f32 %v212, %v1174
      %v1176 = vand.u32 %v1175, 4294901760
      %v1177 = vsub.f32 %v1175, %v1176
      %v1178 = vand.u32 %v1177, 4294901760
      %1179 = vmatprep.subr.mxu0 %v1178
      %v1180 = vand.u32 %v211, 4294901760
      %v1181 = vsub.f32 %v211, %v1180
      %v1182 = vand.u32 %v1181, 4294901760
      %v1183 = vsub.f32 %v1181, %v1182
      %v1184 = vand.u32 %v1183, 4294901760
      %1185 = vmatpush1.msra.mxu0 %v1184
      %v1186 = vand.u32 %v214, 4294901760
      %v1187 = vsub.f32 %v214, %v1186
      %v1188 = vand.u32 %v1187, 4294901760
      %v1189 = vsub.f32 %v1187, %v1188
      %v1190 = vand.u32 %v1189, 4294901760
      %1191 = vmatprep.subr.mxu0 %v1190
      %v1192 = vand.u32 %v213, 4294901760
      %v1193 = vsub.f32 %v213, %v1192
      %v1194 = vand.u32 %v1193, 4294901760
      %v1195 = vsub.f32 %v1193, %v1194
      %v1196 = vand.u32 %v1195, 4294901760
      %1197 = vmatpush1.msra.mxu0 %v1196
      %v1198 = vand.u32 %v216, 4294901760
      %v1199 = vsub.f32 %v216, %v1198
      %v1200 = vand.u32 %v1199, 4294901760
      %v1201 = vsub.f32 %v1199, %v1200
      %v1202 = vand.u32 %v1201, 4294901760
      %1203 = vmatprep.subr.mxu0 %v1202
      %v1204 = vand.u32 %v215, 4294901760
      %v1205 = vsub.f32 %v215, %v1204
      %v1206 = vand.u32 %v1205, 4294901760
      %v1207 = vsub.f32 %v1205, %v1206
      %v1208 = vand.u32 %v1207, 4294901760
      %1209 = vmatpush1.msra.mxu0 %v1208
      %1210 = vmatprep.subr.mxu0 0.0
      %1211 = vmatpush1.msra.mxu0 0.0
      %1212 = vmatprep.subr.mxu0 0.0
      %1213 = vmatpush1.msra.mxu0 0.0
      %1214 = vmatprep.subr.mxu0 0.0
      %1215 = vmatpush1.msra.mxu0 0.0
      %1216 = vmatprep.subr.mxu0 0.0
      %1217 = vmatpush1.msra.mxu0 0.0
      %1218 = vmatprep.subr.mxu0 0.0
      %1219 = vmatpush1.msra.mxu0 0.0
      %1220 = vmatprep.subr.mxu0 0.0
      %1221 = vmatpush1.msra.mxu0 0.0
      %1222 = vmatprep.subr.mxu0 0.0
      %1223 = vmatpush1.msra.mxu0 0.0
      %1224 = vmatprep.subr.mxu0 0.0
      %1225 = vmatpush1.msra.mxu0 0.0
      %1226 = vmatprep.subr.mxu0 0.0
      %1227 = vmatpush1.msra.mxu0 0.0
      %1228 = vmatprep.subr.mxu0 0.0
      %1229 = vmatpush1.msra.mxu0 0.0
      %1230 = vmatprep.subr.mxu0 0.0
      %1231 = vmatpush1.msra.mxu0 0.0
      %1232 = vmatprep.subr.mxu0 0.0
      %1233 = vmatpush1.msra.mxu0 0.0
      %1234 = vmatprep.subr.mxu0 0.0
      %1235 = vmatpush1.msra.mxu0 0.0
      %1236 = vmatprep.subr.mxu0 0.0
      %1237 = vmatpush1.msra.mxu0 0.0
      %1238 = vmatprep.subr.mxu0 0.0
      %1239 = vmatpush1.msra.mxu0 0.0
      %1240 = vmatprep.subr.mxu0 0.0
      %1241 = vmatpush1.msra.mxu0 0.0
      %1242 = vmatprep.subr.mxu0 0.0
      %1243 = vmatpush1.msra.mxu0 0.0
      %1244 = vmatprep.subr.mxu0 0.0
      %1245 = vmatpush1.msra.mxu0 0.0
      %1246 = vmatprep.subr.mxu0 0.0
      %1247 = vmatpush1.msra.mxu0 0.0
      %1248 = vmatprep.subr.mxu0 0.0
      %1249 = vmatpush1.msra.mxu0 0.0
      %1250 = vmatprep.subr.mxu0 0.0
      %1251 = vmatpush1.msra.mxu0 0.0
      %1252 = vmatprep.subr.mxu0 0.0
      %1253 = vmatpush1.msra.mxu0 0.0
      %1254 = vmatprep.subr.mxu0 0.0
      %1255 = vmatpush1.msra.mxu0 0.0
      %1256 = vmatprep.subr.mxu0 0.0
      %1257 = vmatpush1.msra.mxu0 0.0
      %1258 = vmatprep.mubr.f32.mxu0 0.0
      %v1259 = vand.u32 %v994, 4294901760
      %1260 = vmatmul.mubr.f32.gmra.mrb[0].mxu0 %v1259
      %v1261 = vpop.f32.mrb[0].mxu0
      %v1262 = vadd.f32 %v1088, %v1261
      %v1263 = vpop.f32.mrb[0].mxu0
      %v1264 = vadd.f32 %v1090, %v1263
      %1265 = vmatprep.mubr.f32.mxu0 0.0
      %v1266 = vand.u32 %v996, 4294901760
      %1267 = vmatmul.mubr.f32.gmra.mrb[0].mxu0 %v1266
      %v1268 = vpop.f32.mrb[0].mxu0
      %v1269 = vadd.f32 %v1099, %v1268
      %v1270 = vpop.f32.mrb[0].mxu0
      %v1271 = vadd.f32 %v1101, %v1270
      %1272 = vmatprep.mubr.f32.mxu0 0.0
      %v1273 = vand.u32 %v998, 4294901760
      %1274 = vmatmul.mubr.f32.gmra.mrb[0].mxu0 %v1273
      %v1275 = vpop.f32.mrb[0].mxu0
      %v1276 = vadd.f32 %v1110, %v1275
      %v1277 = vpop.f32.mrb[0].mxu0
      %v1278 = vadd.f32 %v1112, %v1277
      %1279 = vdwg.mxu0
      %v1280 = vand.u32 %v202, 4294901760
      %v1281 = vsub.f32 %v202, %v1280
      %1282 = vmatprep.subr.mxu0 %v1281
      %v1283 = vand.u32 %v201, 4294901760
      %v1284 = vsub.f32 %v201, %v1283
      %1285 = vmatpush1.msra.mxu0 %v1284
      %v1286 = vand.u32 %v204, 4294901760
      %v1287 = vsub.f32 %v204, %v1286
      %1288 = vmatprep.subr.mxu0 %v1287
      %v1289 = vand.u32 %v203, 4294901760
      %v1290 = vsub.f32 %v203, %v1289
      %1291 = vmatpush1.msra.mxu0 %v1290
      %v1292 = vand.u32 %v206, 4294901760
      %v1293 = vsub.f32 %v206, %v1292
      %1294 = vmatprep.subr.mxu0 %v1293
      %v1295 = vand.u32 %v205, 4294901760
      %v1296 = vsub.f32 %v205, %v1295
      %1297 = vmatpush1.msra.mxu0 %v1296
      %v1298 = vand.u32 %v208, 4294901760
      %v1299 = vsub.f32 %v208, %v1298
      %1300 = vmatprep.subr.mxu0 %v1299
      %v1301 = vand.u32 %v207, 4294901760
      %v1302 = vsub.f32 %v207, %v1301
      %1303 = vmatpush1.msra.mxu0 %v1302
      %v1304 = vand.u32 %v210, 4294901760
      %v1305 = vsub.f32 %v210, %v1304
      %1306 = vmatprep.subr.mxu0 %v1305
      %v1307 = vand.u32 %v209, 4294901760
      %v1308 = vsub.f32 %v209, %v1307
      %1309 = vmatpush1.msra.mxu0 %v1308
      %v1310 = vand.u32 %v212, 4294901760
      %v1311 = vsub.f32 %v212, %v1310
      %1312 = vmatprep.subr.mxu0 %v1311
      %v1313 = vand.u32 %v211, 4294901760
      %v1314 = vsub.f32 %v211, %v1313
      %1315 = vmatpush1.msra.mxu0 %v1314
      %v1316 = vand.u32 %v214, 4294901760
      %v1317 = vsub.f32 %v214, %v1316
      %1318 = vmatprep.subr.mxu0 %v1317
      %v1319 = vand.u32 %v213, 4294901760
      %v1320 = vsub.f32 %v213, %v1319
      %1321 = vmatpush1.msra.mxu0 %v1320
      %v1322 = vand.u32 %v216, 4294901760
      %v1323 = vsub.f32 %v216, %v1322
      %1324 = vmatprep.subr.mxu0 %v1323
      %v1325 = vand.u32 %v215, 4294901760
      %v1326 = vsub.f32 %v215, %v1325
      %1327 = vmatpush1.msra.mxu0 %v1326
      %1328 = vmatprep.subr.mxu0 0.0
      %1329 = vmatpush1.msra.mxu0 0.0
      %1330 = vmatprep.subr.mxu0 0.0
      %1331 = vmatpush1.msra.mxu0 0.0
      %1332 = vmatprep.subr.mxu0 0.0
      %1333 = vmatpush1.msra.mxu0 0.0
      %1334 = vmatprep.subr.mxu0 0.0
      %1335 = vmatpush1.msra.mxu0 0.0
      %1336 = vmatprep.subr.mxu0 0.0
      %1337 = vmatpush1.msra.mxu0 0.0
      %1338 = vmatprep.subr.mxu0 0.0
      %1339 = vmatpush1.msra.mxu0 0.0
      %1340 = vmatprep.subr.mxu0 0.0
      %1341 = vmatpush1.msra.mxu0 0.0
      %1342 = vmatprep.subr.mxu0 0.0
      %1343 = vmatpush1.msra.mxu0 0.0
      %1344 = vmatprep.subr.mxu0 0.0
      %1345 = vmatpush1.msra.mxu0 0.0
      %1346 = vmatprep.subr.mxu0 0.0
      %1347 = vmatpush1.msra.mxu0 0.0
      %1348 = vmatprep.subr.mxu0 0.0
      %1349 = vmatpush1.msra.mxu0 0.0
      %1350 = vmatprep.subr.mxu0 0.0
      %1351 = vmatpush1.msra.mxu0 0.0
      %1352 = vmatprep.subr.mxu0 0.0
      %1353 = vmatpush1.msra.mxu0 0.0
      %1354 = vmatprep.subr.mxu0 0.0
      %1355 = vmatpush1.msra.mxu0 0.0
      %1356 = vmatprep.subr.mxu0 0.0
      %1357 = vmatpush1.msra.mxu0 0.0
      %1358 = vmatprep.subr.mxu0 0.0
      %1359 = vmatpush1.msra.mxu0 0.0
      %1360 = vmatprep.subr.mxu0 0.0
      %1361 = vmatpush1.msra.mxu0 0.0
      %1362 = vmatprep.subr.mxu0 0.0
      %1363 = vmatpush1.msra.mxu0 0.0
      %1364 = vmatprep.subr.mxu0 0.0
      %1365 = vmatpush1.msra.mxu0 0.0
      %1366 = vmatprep.subr.mxu0 0.0
      %1367 = vmatpush1.msra.mxu0 0.0
      %1368 = vmatprep.subr.mxu0 0.0
      %1369 = vmatpush1.msra.mxu0 0.0
      %1370 = vmatprep.subr.mxu0 0.0
      %1371 = vmatpush1.msra.mxu0 0.0
      %1372 = vmatprep.subr.mxu0 0.0
      %1373 = vmatpush1.msra.mxu0 0.0
      %1374 = vmatprep.subr.mxu0 0.0
      %1375 = vmatpush1.msra.mxu0 0.0
      %1376 = vmatprep.mubr.f32.mxu0 0.0
      %v1377 = vand.u32 %v994, 4294901760
      %v1378 = vsub.f32 %v994, %v1377
      %1379 = vmatmul.mubr.f32.gmra.mrb[0].mxu0 %v1378
      %v1380 = vpop.f32.mrb[0].mxu0
      %v1381 = vadd.f32 %v1262, %v1380
      %v1382 = vpop.f32.mrb[0].mxu0
      %v1383 = vadd.f32 %v1264, %v1382
      %1384 = vmatprep.mubr.f32.mxu0 0.0
      %v1385 = vand.u32 %v996, 4294901760
      %v1386 = vsub.f32 %v996, %v1385
      %1387 = vmatmul.mubr.f32.gmra.mrb[0].mxu0 %v1386
      %v1388 = vpop.f32.mrb[0].mxu0
      %v1389 = vadd.f32 %v1269, %v1388
      %v1390 = vpop.f32.mrb[0].mxu0
      %v1391 = vadd.f32 %v1271, %v1390
      %1392 = vmatprep.mubr.f32.mxu0 0.0
      %v1393 = vand.u32 %v998, 4294901760
      %v1394 = vsub.f32 %v998, %v1393
      %1395 = vmatmul.mubr.f32.gmra.mrb[0].mxu0 %v1394
      %v1396 = vpop.f32.mrb[0].mxu0
      %v1397 = vadd.f32 %v1276, %v1396
      %v1398 = vpop.f32.mrb[0].mxu0
      %v1399 = vadd.f32 %v1278, %v1398
      %1400 = vdwg.mxu0
      %v1401 = vand.u32 %v202, 4294901760
      %1402 = vmatprep.subr.mxu0 %v1401
      %v1403 = vand.u32 %v201, 4294901760
      %1404 = vmatpush1.msra.mxu0 %v1403
      %v1405 = vand.u32 %v204, 4294901760
      %1406 = vmatprep.subr.mxu0 %v1405
      %v1407 = vand.u32 %v203, 4294901760
      %1408 = vmatpush1.msra.mxu0 %v1407
      %v1409 = vand.u32 %v206, 4294901760
      %1410 = vmatprep.subr.mxu0 %v1409
      %v1411 = vand.u32 %v205, 4294901760
      %1412 = vmatpush1.msra.mxu0 %v1411
      %v1413 = vand.u32 %v208, 4294901760
      %1414 = vmatprep.subr.mxu0 %v1413
      %v1415 = vand.u32 %v207, 4294901760
      %1416 = vmatpush1.msra.mxu0 %v1415
      %v1417 = vand.u32 %v210, 4294901760
      %1418 = vmatprep.subr.mxu0 %v1417
      %v1419 = vand.u32 %v209, 4294901760
      %1420 = vmatpush1.msra.mxu0 %v1419
      %v1421 = vand.u32 %v212, 4294901760
      %1422 = vmatprep.subr.mxu0 %v1421
      %v1423 = vand.u32 %v211, 4294901760
      %1424 = vmatpush1.msra.mxu0 %v1423
      %v1425 = vand.u32 %v214, 4294901760
      %1426 = vmatprep.subr.mxu0 %v1425
      %v1427 = vand.u32 %v213, 4294901760
      %1428 = vmatpush1.msra.mxu0 %v1427
      %v1429 = vand.u32 %v216, 4294901760
      %1430 = vmatprep.subr.mxu0 %v1429
      %v1431 = vand.u32 %v215, 4294901760
      %1432 = vmatpush1.msra.mxu0 %v1431
      %1433 = vmatprep.subr.mxu0 0.0
      %1434 = vmatpush1.msra.mxu0 0.0
      %1435 = vmatprep.subr.mxu0 0.0
      %1436 = vmatpush1.msra.mxu0 0.0
      %1437 = vmatprep.subr.mxu0 0.0
      %1438 = vmatpush1.msra.mxu0 0.0
      %1439 = vmatprep.subr.mxu0 0.0
      %1440 = vmatpush1.msra.mxu0 0.0
      %1441 = vmatprep.subr.mxu0 0.0
      %1442 = vmatpush1.msra.mxu0 0.0
      %1443 = vmatprep.subr.mxu0 0.0
      %1444 = vmatpush1.msra.mxu0 0.0
      %1445 = vmatprep.subr.mxu0 0.0
      %1446 = vmatpush1.msra.mxu0 0.0
      %1447 = vmatprep.subr.mxu0 0.0
      %1448 = vmatpush1.msra.mxu0 0.0
      %1449 = vmatprep.subr.mxu0 0.0
      %1450 = vmatpush1.msra.mxu0 0.0
      %1451 = vmatprep.subr.mxu0 0.0
      %1452 = vmatpush1.msra.mxu0 0.0
      %1453 = vmatprep.subr.mxu0 0.0
      %1454 = vmatpush1.msra.mxu0 0.0
      %1455 = vmatprep.subr.mxu0 0.0
      %1456 = vmatpush1.msra.mxu0 0.0
      %1457 = vmatprep.subr.mxu0 0.0
      %1458 = vmatpush1.msra.mxu0 0.0
      %1459 = vmatprep.subr.mxu0 0.0
      %1460 = vmatpush1.msra.mxu0 0.0
      %1461 = vmatprep.subr.mxu0 0.0
      %1462 = vmatpush1.msra.mxu0 0.0
      %1463 = vmatprep.subr.mxu0 0.0
      %1464 = vmatpush1.msra.mxu0 0.0
      %1465 = vmatprep.subr.mxu0 0.0
      %1466 = vmatpush1.msra.mxu0 0.0
      %1467 = vmatprep.subr.mxu0 0.0
      %1468 = vmatpush1.msra.mxu0 0.0
      %1469 = vmatprep.subr.mxu0 0.0
      %1470 = vmatpush1.msra.mxu0 0.0
      %1471 = vmatprep.subr.mxu0 0.0
      %1472 = vmatpush1.msra.mxu0 0.0
      %1473 = vmatprep.subr.mxu0 0.0
      %1474 = vmatpush1.msra.mxu0 0.0
      %1475 = vmatprep.subr.mxu0 0.0
      %1476 = vmatpush1.msra.mxu0 0.0
      %1477 = vmatprep.subr.mxu0 0.0
      %1478 = vmatpush1.msra.mxu0 0.0
      %1479 = vmatprep.subr.mxu0 0.0
      %1480 = vmatpush1.msra.mxu0 0.0
      %1481 = vmatprep.mubr.f32.mxu0 0.0
      %v1482 = vand.u32 %v994, 4294901760
      %v1483 = vsub.f32 %v994, %v1482
      %v1484 = vand.u32 %v1483, 4294901760
      %1485 = vmatmul.mubr.f32.gmra.mrb[0].mxu0 %v1484
      %v1486 = vpop.f32.mrb[0].mxu0
      %v1487 = vadd.f32 %v1381, %v1486
      %v1488 = vpop.f32.mrb[0].mxu0
      %v1489 = vadd.f32 %v1383, %v1488
      %1490 = vmatprep.mubr.f32.mxu0 0.0
      %v1491 = vand.u32 %v996, 4294901760
      %v1492 = vsub.f32 %v996, %v1491
      %v1493 = vand.u32 %v1492, 4294901760
      %1494 = vmatmul.mubr.f32.gmra.mrb[0].mxu0 %v1493
      %v1495 = vpop.f32.mrb[0].mxu0
      %v1496 = vadd.f32 %v1389, %v1495
      %v1497 = vpop.f32.mrb[0].mxu0
      %v1498 = vadd.f32 %v1391, %v1497
      %1499 = vmatprep.mubr.f32.mxu0 0.0
      %v1500 = vand.u32 %v998, 4294901760
      %v1501 = vsub.f32 %v998, %v1500
      %v1502 = vand.u32 %v1501, 4294901760
      %1503 = vmatmul.mubr.f32.gmra.mrb[0].mxu0 %v1502
      %v1504 = vpop.f32.mrb[0].mxu0
      %v1505 = vadd.f32 %v1397, %v1504
      %v1506 = vpop.f32.mrb[0].mxu0
      %v1507 = vadd.f32 %v1399, %v1506
      %1508 = vdwg.mxu0
      %v1509 = vand.u32 %v202, 4294901760
      %v1510 = vsub.f32 %v202, %v1509
      %v1511 = vand.u32 %v1510, 4294901760
      %1512 = vmatprep.subr.mxu0 %v1511
      %v1513 = vand.u32 %v201, 4294901760
      %v1514 = vsub.f32 %v201, %v1513
      %v1515 = vand.u32 %v1514, 4294901760
      %1516 = vmatpush1.msra.mxu0 %v1515
      %v1517 = vand.u32 %v204, 4294901760
      %v1518 = vsub.f32 %v204, %v1517
      %v1519 = vand.u32 %v1518, 4294901760
      %1520 = vmatprep.subr.mxu0 %v1519
      %v1521 = vand.u32 %v203, 4294901760
      %v1522 = vsub.f32 %v203, %v1521
      %v1523 = vand.u32 %v1522, 4294901760
      %1524 = vmatpush1.msra.mxu0 %v1523
      %v1525 = vand.u32 %v206, 4294901760
      %v1526 = vsub.f32 %v206, %v1525
      %v1527 = vand.u32 %v1526, 4294901760
      %1528 = vmatprep.subr.mxu0 %v1527
      %v1529 = vand.u32 %v205, 4294901760
      %v1530 = vsub.f32 %v205, %v1529
      %v1531 = vand.u32 %v1530, 4294901760
      %1532 = vmatpush1.msra.mxu0 %v1531
      %v1533 = vand.u32 %v208, 4294901760
      %v1534 = vsub.f32 %v208, %v1533
      %v1535 = vand.u32 %v1534, 4294901760
      %1536 = vmatprep.subr.mxu0 %v1535
      %v1537 = vand.u32 %v207, 4294901760
      %v1538 = vsub.f32 %v207, %v1537
      %v1539 = vand.u32 %v1538, 4294901760
      %1540 = vmatpush1.msra.mxu0 %v1539
      %v1541 = vand.u32 %v210, 4294901760
      %v1542 = vsub.f32 %v210, %v1541
      %v1543 = vand.u32 %v1542, 4294901760
      %1544 = vmatprep.subr.mxu0 %v1543
      %v1545 = vand.u32 %v209, 4294901760
      %v1546 = vsub.f32 %v209, %v1545
      %v1547 = vand.u32 %v1546, 4294901760
      %1548 = vmatpush1.msra.mxu0 %v1547
      %v1549 = vand.u32 %v212, 4294901760
      %v1550 = vsub.f32 %v212, %v1549
      %v1551 = vand.u32 %v1550, 4294901760
      %1552 = vmatprep.subr.mxu0 %v1551
      %v1553 = vand.u32 %v211, 4294901760
      %v1554 = vsub.f32 %v211, %v1553
      %v1555 = vand.u32 %v1554, 4294901760
      %1556 = vmatpush1.msra.mxu0 %v1555
      %v1557 = vand.u32 %v214, 4294901760
      %v1558 = vsub.f32 %v214, %v1557
      %v1559 = vand.u32 %v1558, 4294901760
      %1560 = vmatprep.subr.mxu0 %v1559
      %v1561 = vand.u32 %v213, 4294901760
      %v1562 = vsub.f32 %v213, %v1561
      %v1563 = vand.u32 %v1562, 4294901760
      %1564 = vmatpush1.msra.mxu0 %v1563
      %v1565 = vand.u32 %v216, 4294901760
      %v1566 = vsub.f32 %v216, %v1565
      %v1567 = vand.u32 %v1566, 4294901760
      %1568 = vmatprep.subr.mxu0 %v1567
      %v1569 = vand.u32 %v215, 4294901760
      %v1570 = vsub.f32 %v215, %v1569
      %v1571 = vand.u32 %v1570, 4294901760
      %1572 = vmatpush1.msra.mxu0 %v1571
      %1573 = vmatprep.subr.mxu0 0.0
      %1574 = vmatpush1.msra.mxu0 0.0
      %1575 = vmatprep.subr.mxu0 0.0
      %1576 = vmatpush1.msra.mxu0 0.0
      %1577 = vmatprep.subr.mxu0 0.0
      %1578 = vmatpush1.msra.mxu0 0.0
      %1579 = vmatprep.subr.mxu0 0.0
      %1580 = vmatpush1.msra.mxu0 0.0
      %1581 = vmatprep.subr.mxu0 0.0
      %1582 = vmatpush1.msra.mxu0 0.0
      %1583 = vmatprep.subr.mxu0 0.0
      %1584 = vmatpush1.msra.mxu0 0.0
      %1585 = vmatprep.subr.mxu0 0.0
      %1586 = vmatpush1.msra.mxu0 0.0
      %1587 = vmatprep.subr.mxu0 0.0
      %1588 = vmatpush1.msra.mxu0 0.0
      %1589 = vmatprep.subr.mxu0 0.0
      %1590 = vmatpush1.msra.mxu0 0.0
      %1591 = vmatprep.subr.mxu0 0.0
      %1592 = vmatpush1.msra.mxu0 0.0
      %1593 = vmatprep.subr.mxu0 0.0
      %1594 = vmatpush1.msra.mxu0 0.0
      %1595 = vmatprep.subr.mxu0 0.0
      %1596 = vmatpush1.msra.mxu0 0.0
      %1597 = vmatprep.subr.mxu0 0.0
      %1598 = vmatpush1.msra.mxu0 0.0
      %1599 = vmatprep.subr.mxu0 0.0
      %1600 = vmatpush1.msra.mxu0 0.0
      %1601 = vmatprep.subr.mxu0 0.0
      %1602 = vmatpush1.msra.mxu0 0.0
      %1603 = vmatprep.subr.mxu0 0.0
      %1604 = vmatpush1.msra.mxu0 0.0
      %1605 = vmatprep.subr.mxu0 0.0
      %1606 = vmatpush1.msra.mxu0 0.0
      %1607 = vmatprep.subr.mxu0 0.0
      %1608 = vmatpush1.msra.mxu0 0.0
      %1609 = vmatprep.subr.mxu0 0.0
      %1610 = vmatpush1.msra.mxu0 0.0
      %1611 = vmatprep.subr.mxu0 0.0
      %1612 = vmatpush1.msra.mxu0 0.0
      %1613 = vmatprep.subr.mxu0 0.0
      %1614 = vmatpush1.msra.mxu0 0.0
      %1615 = vmatprep.subr.mxu0 0.0
      %1616 = vmatpush1.msra.mxu0 0.0
      %1617 = vmatprep.subr.mxu0 0.0
      %1618 = vmatpush1.msra.mxu0 0.0
      %1619 = vmatprep.subr.mxu0 0.0
      %1620 = vmatpush1.msra.mxu0 0.0
      %1621 = vmatprep.mubr.f32.mxu0 0.0
      %v1622 = vand.u32 %v994, 4294901760
      %1623 = vmatmul.mubr.f32.gmra.mrb[0].mxu0 %v1622
      %v1624 = vpop.f32.mrb[0].mxu0
      %v1625 = vadd.f32 %v1487, %v1624
      %v1626 = vpop.f32.mrb[0].mxu0
      %v1627 = vadd.f32 %v1489, %v1626
      %1628 = vmatprep.mubr.f32.mxu0 0.0
      %v1629 = vand.u32 %v996, 4294901760
      %1630 = vmatmul.mubr.f32.gmra.mrb[0].mxu0 %v1629
      %v1631 = vpop.f32.mrb[0].mxu0
      %v1632 = vadd.f32 %v1496, %v1631
      %v1633 = vpop.f32.mrb[0].mxu0
      %v1634 = vadd.f32 %v1498, %v1633
      %1635 = vmatprep.mubr.f32.mxu0 0.0
      %v1636 = vand.u32 %v998, 4294901760
      %1637 = vmatmul.mubr.f32.gmra.mrb[0].mxu0 %v1636
      %v1638 = vpop.f32.mrb[0].mxu0
      %v1639 = vadd.f32 %v1505, %v1638
      %v1640 = vpop.f32.mrb[0].mxu0
      %v1641 = vadd.f32 %v1507, %v1640
      %1642 = vdwg.mxu0
      %v1643 = vand.u32 %v202, 4294901760
      %1644 = vmatprep.subr.mxu0 %v1643
      %v1645 = vand.u32 %v201, 4294901760
      %1646 = vmatpush1.msra.mxu0 %v1645
      %v1647 = vand.u32 %v204, 4294901760
      %1648 = vmatprep.subr.mxu0 %v1647
      %v1649 = vand.u32 %v203, 4294901760
      %1650 = vmatpush1.msra.mxu0 %v1649
      %v1651 = vand.u32 %v206, 4294901760
      %1652 = vmatprep.subr.mxu0 %v1651
      %v1653 = vand.u32 %v205, 4294901760
      %1654 = vmatpush1.msra.mxu0 %v1653
      %v1655 = vand.u32 %v208, 4294901760
      %1656 = vmatprep.subr.mxu0 %v1655
      %v1657 = vand.u32 %v207, 4294901760
      %1658 = vmatpush1.msra.mxu0 %v1657
      %v1659 = vand.u32 %v210, 4294901760
      %1660 = vmatprep.subr.mxu0 %v1659
      %v1661 = vand.u32 %v209, 4294901760
      %1662 = vmatpush1.msra.mxu0 %v1661
      %v1663 = vand.u32 %v212, 4294901760
      %1664 = vmatprep.subr.mxu0 %v1663
      %v1665 = vand.u32 %v211, 4294901760
      %1666 = vmatpush1.msra.mxu0 %v1665
      %v1667 = vand.u32 %v214, 4294901760
      %1668 = vmatprep.subr.mxu0 %v1667
      %v1669 = vand.u32 %v213, 4294901760
      %1670 = vmatpush1.msra.mxu0 %v1669
      %v1671 = vand.u32 %v216, 4294901760
      %1672 = vmatprep.subr.mxu0 %v1671
      %v1673 = vand.u32 %v215, 4294901760
      %1674 = vmatpush1.msra.mxu0 %v1673
      %1675 = vmatprep.subr.mxu0 0.0
      %1676 = vmatpush1.msra.mxu0 0.0
      %1677 = vmatprep.subr.mxu0 0.0
      %1678 = vmatpush1.msra.mxu0 0.0
      %1679 = vmatprep.subr.mxu0 0.0
      %1680 = vmatpush1.msra.mxu0 0.0
      %1681 = vmatprep.subr.mxu0 0.0
      %1682 = vmatpush1.msra.mxu0 0.0
      %1683 = vmatprep.subr.mxu0 0.0
      %1684 = vmatpush1.msra.mxu0 0.0
      %1685 = vmatprep.subr.mxu0 0.0
      %1686 = vmatpush1.msra.mxu0 0.0
      %1687 = vmatprep.subr.mxu0 0.0
      %1688 = vmatpush1.msra.mxu0 0.0
      %1689 = vmatprep.subr.mxu0 0.0
      %1690 = vmatpush1.msra.mxu0 0.0
      %1691 = vmatprep.subr.mxu0 0.0
      %1692 = vmatpush1.msra.mxu0 0.0
      %1693 = vmatprep.subr.mxu0 0.0
      %1694 = vmatpush1.msra.mxu0 0.0
      %1695 = vmatprep.subr.mxu0 0.0
      %1696 = vmatpush1.msra.mxu0 0.0
      %1697 = vmatprep.subr.mxu0 0.0
      %1698 = vmatpush1.msra.mxu0 0.0
      %1699 = vmatprep.subr.mxu0 0.0
      %1700 = vmatpush1.msra.mxu0 0.0
      %1701 = vmatprep.subr.mxu0 0.0
      %1702 = vmatpush1.msra.mxu0 0.0
      %1703 = vmatprep.subr.mxu0 0.0
      %1704 = vmatpush1.msra.mxu0 0.0
      %1705 = vmatprep.subr.mxu0 0.0
      %1706 = vmatpush1.msra.mxu0 0.0
      %1707 = vmatprep.subr.mxu0 0.0
      %1708 = vmatpush1.msra.mxu0 0.0
      %1709 = vmatprep.subr.mxu0 0.0
      %1710 = vmatpush1.msra.mxu0 0.0
      %1711 = vmatprep.subr.mxu0 0.0
      %1712 = vmatpush1.msra.mxu0 0.0
      %1713 = vmatprep.subr.mxu0 0.0
      %1714 = vmatpush1.msra.mxu0 0.0
      %1715 = vmatprep.subr.mxu0 0.0
      %1716 = vmatpush1.msra.mxu0 0.0
      %1717 = vmatprep.subr.mxu0 0.0
      %1718 = vmatpush1.msra.mxu0 0.0
      %1719 = vmatprep.subr.mxu0 0.0
      %1720 = vmatpush1.msra.mxu0 0.0
      %1721 = vmatprep.subr.mxu0 0.0
      %1722 = vmatpush1.msra.mxu0 0.0
      %1723 = vmatprep.mubr.f32.mxu0 0.0
      %v1724 = vand.u32 %v994, 4294901760
      %1725 = vmatmul.mubr.f32.gmra.mrb[0].mxu0 %v1724
      %v1726 = vpop.f32.mrb[0].mxu0
      %v1727 = vadd.f32 %v1625, %v1726
      %v1728 = vpop.f32.mrb[0].mxu0
      %v1729 = vadd.f32 %v1627, %v1728
      %1730 = vmatprep.mubr.f32.mxu0 0.0
      %v1731 = vand.u32 %v996, 4294901760
      %1732 = vmatmul.mubr.f32.gmra.mrb[0].mxu0 %v1731
      %v1733 = vpop.f32.mrb[0].mxu0
      %v1734 = vadd.f32 %v1632, %v1733
      %v1735 = vpop.f32.mrb[0].mxu0
      %v1736 = vadd.f32 %v1634, %v1735
      %1737 = vmatprep.mubr.f32.mxu0 0.0
      %v1738 = vand.u32 %v998, 4294901760
      %1739 = vmatmul.mubr.f32.gmra.mrb[0].mxu0 %v1738
      %v1740 = vpop.f32.mrb[0].mxu0
      %v1741 = vadd.f32 %v1639, %v1740
      %v1742 = vpop.f32.mrb[0].mxu0
      %v1743 = vadd.f32 %v1641, %v1742
      %1744 = vdwg.mxu0
      %v1745 = vmul.f32 %v1727, %v1727
      %v1746 = vmul.f32 %v1734, %v1734
      %v1747 = vmul.f32 %v1741, %v1741
      %v1748 = vmul.f32 %v1729, %v1729
      %v1749 = vmul.f32 %v1736, %v1736
      %v1750 = vmul.f32 %v1743, %v1743
      %v1751 = vadd.f32 %v1745, %v1748
      %v1752 = vadd.f32 %v1746, %v1749
      %v1753 = vadd.f32 %v1747, %v1750
      %v1754 = vld [vmem:[%s3] sm:$0xff]
      %v1755 = vld [vmem:[%s3 + $0x8] sm:$0xff]
      %v1756 = vld [vmem:[%s3 + $0x10] sm:$0xff]
      %v1757 = vld [vmem:[%s3 + $0x18] sm:$0xff]
      %v1758 = vld [vmem:[%s3 + $0x20] sm:$0xff]
      %v1759 = vld [vmem:[%s3 + $0x28] sm:$0xff]
      %v1760 = vld [vmem:[%s3 + $0x30] sm:$0xff]
      %v1761 = vld [vmem:[%s3 + $0x38] sm:$0xff]
      %v1762 = vld [vmem:[%s3 + $0x40] sm:$0xff]
      %v1763 = vld [vmem:[%s3 + $0x48] sm:$0xff]
      %v1764 = vld [vmem:[%s3 + $0x50] sm:$0xff]
      %v1765 = vld [vmem:[%s3 + $0x58] sm:$0xff]
      %v1766 = vld [vmem:[%s3 + $0x60] sm:$0xff]
      %v1767 = vld [vmem:[%s3 + $0x68] sm:$0xff]
      %v1768 = vld [vmem:[%s3 + $0x70] sm:$0xff]
      %v1769 = vld [vmem:[%s3 + $0x78] sm:$0xff]
      %1770 = vmatprep.subr.mxu0 0.0
      %v1771 = vand.u32 %v1754, 4294901760
      %1772 = vmatpush1.msra.mxu0 %v1771
      %1773 = vmatprep.subr.mxu0 0.0
      %v1774 = vand.u32 %v1755, 4294901760
      %1775 = vmatpush1.msra.mxu0 %v1774
      %1776 = vmatprep.subr.mxu0 0.0
      %v1777 = vand.u32 %v1756, 4294901760
      %1778 = vmatpush1.msra.mxu0 %v1777
      %1779 = vmatprep.subr.mxu0 0.0
      %v1780 = vand.u32 %v1757, 4294901760
      %1781 = vmatpush1.msra.mxu0 %v1780
      %1782 = vmatprep.subr.mxu0 0.0
      %v1783 = vand.u32 %v1758, 4294901760
      %1784 = vmatpush1.msra.mxu0 %v1783
      %1785 = vmatprep.subr.mxu0 0.0
      %v1786 = vand.u32 %v1759, 4294901760
      %1787 = vmatpush1.msra.mxu0 %v1786
      %1788 = vmatprep.subr.mxu0 0.0
      %v1789 = vand.u32 %v1760, 4294901760
      %1790 = vmatpush1.msra.mxu0 %v1789
      %1791 = vmatprep.subr.mxu0 0.0
      %v1792 = vand.u32 %v1761, 4294901760
      %1793 = vmatpush1.msra.mxu0 %v1792
      %1794 = vmatprep.subr.mxu0 0.0
      %v1795 = vand.u32 %v1762, 4294901760
      %1796 = vmatpush1.msra.mxu0 %v1795
      %1797 = vmatprep.subr.mxu0 0.0
      %v1798 = vand.u32 %v1763, 4294901760
      %1799 = vmatpush1.msra.mxu0 %v1798
      %1800 = vmatprep.subr.mxu0 0.0
      %v1801 = vand.u32 %v1764, 4294901760
      %1802 = vmatpush1.msra.mxu0 %v1801
      %1803 = vmatprep.subr.mxu0 0.0
      %v1804 = vand.u32 %v1765, 4294901760
      %1805 = vmatpush1.msra.mxu0 %v1804
      %1806 = vmatprep.subr.mxu0 0.0
      %v1807 = vand.u32 %v1766, 4294901760
      %1808 = vmatpush1.msra.mxu0 %v1807
      %1809 = vmatprep.subr.mxu0 0.0
      %v1810 = vand.u32 %v1767, 4294901760
      %1811 = vmatpush1.msra.mxu0 %v1810
      %1812 = vmatprep.subr.mxu0 0.0
      %v1813 = vand.u32 %v1768, 4294901760
      %1814 = vmatpush1.msra.mxu0 %v1813
      %1815 = vmatprep.subr.mxu0 0.0
      %v1816 = vand.u32 %v1769, 4294901760
      %1817 = vmatpush1.msra.mxu0 %v1816
      %1818 = vmatprep.subr.mxu0 0.0
      %1819 = vmatpush1.msra.mxu0 0.0
      %1820 = vmatprep.subr.mxu0 0.0
      %1821 = vmatpush1.msra.mxu0 0.0
      %1822 = vmatprep.subr.mxu0 0.0
      %1823 = vmatpush1.msra.mxu0 0.0
      %1824 = vmatprep.subr.mxu0 0.0
      %1825 = vmatpush1.msra.mxu0 0.0
      %1826 = vmatprep.subr.mxu0 0.0
      %1827 = vmatpush1.msra.mxu0 0.0
      %1828 = vmatprep.subr.mxu0 0.0
      %1829 = vmatpush1.msra.mxu0 0.0
      %1830 = vmatprep.subr.mxu0 0.0
      %1831 = vmatpush1.msra.mxu0 0.0
      %1832 = vmatprep.subr.mxu0 0.0
      %1833 = vmatpush1.msra.mxu0 0.0
      %1834 = vmatprep.subr.mxu0 0.0
      %1835 = vmatpush1.msra.mxu0 0.0
      %1836 = vmatprep.subr.mxu0 0.0
      %1837 = vmatpush1.msra.mxu0 0.0
      %1838 = vmatprep.subr.mxu0 0.0
      %1839 = vmatpush1.msra.mxu0 0.0
      %1840 = vmatprep.subr.mxu0 0.0
      %1841 = vmatpush1.msra.mxu0 0.0
      %1842 = vmatprep.subr.mxu0 0.0
      %1843 = vmatpush1.msra.mxu0 0.0
      %1844 = vmatprep.subr.mxu0 0.0
      %1845 = vmatpush1.msra.mxu0 0.0
      %1846 = vmatprep.subr.mxu0 0.0
      %1847 = vmatpush1.msra.mxu0 0.0
      %1848 = vmatprep.subr.mxu0 0.0
      %1849 = vmatpush1.msra.mxu0 0.0
      %1850 = vmatprep.mubr.f32.mxu0 0.0
      %v1851 = vand.u32 %v1751, 4294901760
      %v1852 = vsub.f32 %v1751, %v1851
      %v1853 = vand.u32 %v1852, 4294901760
      %v1854 = vsub.f32 %v1852, %v1853
      %v1855 = vand.u32 %v1854, 4294901760
      %1856 = vmatmul.mubr.f32.gmra.mrb[0].mxu0 %v1855
      %v1857 = vpop.f32.mrb[0].mxu0
      %v1858 = vadd.f32 0.0, %v1857
      %v1859 = vpop.f32.mrb[0].mxu0
      %1860 = vmatprep.mubr.f32.mxu0 0.0
      %v1861 = vand.u32 %v1752, 4294901760
      %v1862 = vsub.f32 %v1752, %v1861
      %v1863 = vand.u32 %v1862, 4294901760
      %v1864 = vsub.f32 %v1862, %v1863
      %v1865 = vand.u32 %v1864, 4294901760
      %1866 = vmatmul.mubr.f32.gmra.mrb[0].mxu0 %v1865
      %v1867 = vpop.f32.mrb[0].mxu0
      %v1868 = vadd.f32 0.0, %v1867
      %v1869 = vpop.f32.mrb[0].mxu0
      %1870 = vmatprep.mubr.f32.mxu0 0.0
      %v1871 = vand.u32 %v1753, 4294901760
      %v1872 = vsub.f32 %v1753, %v1871
      %v1873 = vand.u32 %v1872, 4294901760
      %v1874 = vsub.f32 %v1872, %v1873
      %v1875 = vand.u32 %v1874, 4294901760
      %1876 = vmatmul.mubr.f32.gmra.mrb[0].mxu0 %v1875
      %v1877 = vpop.f32.mrb[0].mxu0
      %v1878 = vadd.f32 0.0, %v1877
      %v1879 = vpop.f32.mrb[0].mxu0
      %1880 = vdwg.mxu0
      %1881 = vmatprep.subr.mxu0 0.0
      %v1882 = vand.u32 %v1754, 4294901760
      %v1883 = vsub.f32 %v1754, %v1882
      %v1884 = vand.u32 %v1883, 4294901760
      %v1885 = vsub.f32 %v1883, %v1884
      %v1886 = vand.u32 %v1885, 4294901760
      %1887 = vmatpush1.msra.mxu0 %v1886
      %1888 = vmatprep.subr.mxu0 0.0
      %v1889 = vand.u32 %v1755, 4294901760
      %v1890 = vsub.f32 %v1755, %v1889
      %v1891 = vand.u32 %v1890, 4294901760
      %v1892 = vsub.f32 %v1890, %v1891
      %v1893 = vand.u32 %v1892, 4294901760
      %1894 = vmatpush1.msra.mxu0 %v1893
      %1895 = vmatprep.subr.mxu0 0.0
      %v1896 = vand.u32 %v1756, 4294901760
      %v1897 = vsub.f32 %v1756, %v1896
      %v1898 = vand.u32 %v1897, 4294901760
      %v1899 = vsub.f32 %v1897, %v1898
      %v1900 = vand.u32 %v1899, 4294901760
      %1901 = vmatpush1.msra.mxu0 %v1900
      %1902 = vmatprep.subr.mxu0 0.0
      %v1903 = vand.u32 %v1757, 4294901760
      %v1904 = vsub.f32 %v1757, %v1903
      %v1905 = vand.u32 %v1904, 4294901760
      %v1906 = vsub.f32 %v1904, %v1905
      %v1907 = vand.u32 %v1906, 4294901760
      %1908 = vmatpush1.msra.mxu0 %v1907
      %1909 = vmatprep.subr.mxu0 0.0
      %v1910 = vand.u32 %v1758, 4294901760
      %v1911 = vsub.f32 %v1758, %v1910
      %v1912 = vand.u32 %v1911, 4294901760
      %v1913 = vsub.f32 %v1911, %v1912
      %v1914 = vand.u32 %v1913, 4294901760
      %1915 = vmatpush1.msra.mxu0 %v1914
      %1916 = vmatprep.subr.mxu0 0.0
      %v1917 = vand.u32 %v1759, 4294901760
      %v1918 = vsub.f32 %v1759, %v1917
      %v1919 = vand.u32 %v1918, 4294901760
      %v1920 = vsub.f32 %v1918, %v1919
      %v1921 = vand.u32 %v1920, 4294901760
      %1922 = vmatpush1.msra.mxu0 %v1921
      %1923 = vmatprep.subr.mxu0 0.0
      %v1924 = vand.u32 %v1760, 4294901760
      %v1925 = vsub.f32 %v1760, %v1924
      %v1926 = vand.u32 %v1925, 4294901760
      %v1927 = vsub.f32 %v1925, %v1926
      %v1928 = vand.u32 %v1927, 4294901760
      %1929 = vmatpush1.msra.mxu0 %v1928
      %1930 = vmatprep.subr.mxu0 0.0
      %v1931 = vand.u32 %v1761, 4294901760
      %v1932 = vsub.f32 %v1761, %v1931
      %v1933 = vand.u32 %v1932, 4294901760
      %v1934 = vsub.f32 %v1932, %v1933
      %v1935 = vand.u32 %v1934, 4294901760
      %1936 = vmatpush1.msra.mxu0 %v1935
      %1937 = vmatprep.subr.mxu0 0.0
      %v1938 = vand.u32 %v1762, 4294901760
      %v1939 = vsub.f32 %v1762, %v1938
      %v1940 = vand.u32 %v1939, 4294901760
      %v1941 = vsub.f32 %v1939, %v1940
      %v1942 = vand.u32 %v1941, 4294901760
      %1943 = vmatpush1.msra.mxu0 %v1942
      %1944 = vmatprep.subr.mxu0 0.0
      %v1945 = vand.u32 %v1763, 4294901760
      %v1946 = vsub.f32 %v1763, %v1945
      %v1947 = vand.u32 %v1946, 4294901760
      %v1948 = vsub.f32 %v1946, %v1947
      %v1949 = vand.u32 %v1948, 4294901760
      %1950 = vmatpush1.msra.mxu0 %v1949
      %1951 = vmatprep.subr.mxu0 0.0
      %v1952 = vand.u32 %v1764, 4294901760
      %v1953 = vsub.f32 %v1764, %v1952
      %v1954 = vand.u32 %v1953, 4294901760
      %v1955 = vsub.f32 %v1953, %v1954
      %v1956 = vand.u32 %v1955, 4294901760
      %1957 = vmatpush1.msra.mxu0 %v1956
      %1958 = vmatprep.subr.mxu0 0.0
      %v1959 = vand.u32 %v1765, 4294901760
      %v1960 = vsub.f32 %v1765, %v1959
      %v1961 = vand.u32 %v1960, 4294901760
      %v1962 = vsub.f32 %v1960, %v1961
      %v1963 = vand.u32 %v1962, 4294901760
      %1964 = vmatpush1.msra.mxu0 %v1963
      %1965 = vmatprep.subr.mxu0 0.0
      %v1966 = vand.u32 %v1766, 4294901760
      %v1967 = vsub.f32 %v1766, %v1966
      %v1968 = vand.u32 %v1967, 4294901760
      %v1969 = vsub.f32 %v1967, %v1968
      %v1970 = vand.u32 %v1969, 4294901760
      %1971 = vmatpush1.msra.mxu0 %v1970
      %1972 = vmatprep.subr.mxu0 0.0
      %v1973 = vand.u32 %v1767, 4294901760
      %v1974 = vsub.f32 %v1767, %v1973
      %v1975 = vand.u32 %v1974, 4294901760
      %v1976 = vsub.f32 %v1974, %v1975
      %v1977 = vand.u32 %v1976, 4294901760
      %1978 = vmatpush1.msra.mxu0 %v1977
      %1979 = vmatprep.subr.mxu0 0.0
      %v1980 = vand.u32 %v1768, 4294901760
      %v1981 = vsub.f32 %v1768, %v1980
      %v1982 = vand.u32 %v1981, 4294901760
      %v1983 = vsub.f32 %v1981, %v1982
      %v1984 = vand.u32 %v1983, 4294901760
      %1985 = vmatpush1.msra.mxu0 %v1984
      %1986 = vmatprep.subr.mxu0 0.0
      %v1987 = vand.u32 %v1769, 4294901760
      %v1988 = vsub.f32 %v1769, %v1987
      %v1989 = vand.u32 %v1988, 4294901760
      %v1990 = vsub.f32 %v1988, %v1989
      %v1991 = vand.u32 %v1990, 4294901760
      %1992 = vmatpush1.msra.mxu0 %v1991
      %1993 = vmatprep.subr.mxu0 0.0
      %1994 = vmatpush1.msra.mxu0 0.0
      %1995 = vmatprep.subr.mxu0 0.0
      %1996 = vmatpush1.msra.mxu0 0.0
      %1997 = vmatprep.subr.mxu0 0.0
      %1998 = vmatpush1.msra.mxu0 0.0
      %1999 = vmatprep.subr.mxu0 0.0
      %2000 = vmatpush1.msra.mxu0 0.0
      %2001 = vmatprep.subr.mxu0 0.0
      %2002 = vmatpush1.msra.mxu0 0.0
      %2003 = vmatprep.subr.mxu0 0.0
      %2004 = vmatpush1.msra.mxu0 0.0
      %2005 = vmatprep.subr.mxu0 0.0
      %2006 = vmatpush1.msra.mxu0 0.0
      %2007 = vmatprep.subr.mxu0 0.0
      %2008 = vmatpush1.msra.mxu0 0.0
      %2009 = vmatprep.subr.mxu0 0.0
      %2010 = vmatpush1.msra.mxu0 0.0
      %2011 = vmatprep.subr.mxu0 0.0
      %2012 = vmatpush1.msra.mxu0 0.0
      %2013 = vmatprep.subr.mxu0 0.0
      %2014 = vmatpush1.msra.mxu0 0.0
      %2015 = vmatprep.subr.mxu0 0.0
      %2016 = vmatpush1.msra.mxu0 0.0
      %2017 = vmatprep.subr.mxu0 0.0
      %2018 = vmatpush1.msra.mxu0 0.0
      %2019 = vmatprep.subr.mxu0 0.0
      %2020 = vmatpush1.msra.mxu0 0.0
      %2021 = vmatprep.subr.mxu0 0.0
      %2022 = vmatpush1.msra.mxu0 0.0
      %2023 = vmatprep.subr.mxu0 0.0
      %2024 = vmatpush1.msra.mxu0 0.0
      %2025 = vmatprep.mubr.f32.mxu0 0.0
      %v2026 = vand.u32 %v1751, 4294901760
      %2027 = vmatmul.mubr.f32.gmra.mrb[0].mxu0 %v2026
      %v2028 = vpop.f32.mrb[0].mxu0
      %v2029 = vadd.f32 %v1858, %v2028
      %v2030 = vpop.f32.mrb[0].mxu0
      %2031 = vmatprep.mubr.f32.mxu0 0.0
      %v2032 = vand.u32 %v1752, 4294901760
      %2033 = vmatmul.mubr.f32.gmra.mrb[0].mxu0 %v2032
      %v2034 = vpop.f32.mrb[0].mxu0
      %v2035 = vadd.f32 %v1868, %v2034
      %v2036 = vpop.f32.mrb[0].mxu0
      %2037 = vmatprep.mubr.f32.mxu0 0.0
      %v2038 = vand.u32 %v1753, 4294901760
      %2039 = vmatmul.mubr.f32.gmra.mrb[0].mxu0 %v2038
      %v2040 = vpop.f32.mrb[0].mxu0
      %v2041 = vadd.f32 %v1878, %v2040
      %v2042 = vpop.f32.mrb[0].mxu0
      %2043 = vdwg.mxu0
      %2044 = vmatprep.subr.mxu0 0.0
      %v2045 = vand.u32 %v1754, 4294901760
      %v2046 = vsub.f32 %v1754, %v2045
      %2047 = vmatpush1.msra.mxu0 %v2046
      %2048 = vmatprep.subr.mxu0 0.0
      %v2049 = vand.u32 %v1755, 4294901760
      %v2050 = vsub.f32 %v1755, %v2049
      %2051 = vmatpush1.msra.mxu0 %v2050
      %2052 = vmatprep.subr.mxu0 0.0
      %v2053 = vand.u32 %v1756, 4294901760
      %v2054 = vsub.f32 %v1756, %v2053
      %2055 = vmatpush1.msra.mxu0 %v2054
      %2056 = vmatprep.subr.mxu0 0.0
      %v2057 = vand.u32 %v1757, 4294901760
      %v2058 = vsub.f32 %v1757, %v2057
      %2059 = vmatpush1.msra.mxu0 %v2058
      %2060 = vmatprep.subr.mxu0 0.0
      %v2061 = vand.u32 %v1758, 4294901760
      %v2062 = vsub.f32 %v1758, %v2061
      %2063 = vmatpush1.msra.mxu0 %v2062
      %2064 = vmatprep.subr.mxu0 0.0
      %v2065 = vand.u32 %v1759, 4294901760
      %v2066 = vsub.f32 %v1759, %v2065
      %2067 = vmatpush1.msra.mxu0 %v2066
      %2068 = vmatprep.subr.mxu0 0.0
      %v2069 = vand.u32 %v1760, 4294901760
      %v2070 = vsub.f32 %v1760, %v2069
      %2071 = vmatpush1.msra.mxu0 %v2070
      %2072 = vmatprep.subr.mxu0 0.0
      %v2073 = vand.u32 %v1761, 4294901760
      %v2074 = vsub.f32 %v1761, %v2073
      %2075 = vmatpush1.msra.mxu0 %v2074
      %2076 = vmatprep.subr.mxu0 0.0
      %v2077 = vand.u32 %v1762, 4294901760
      %v2078 = vsub.f32 %v1762, %v2077
      %2079 = vmatpush1.msra.mxu0 %v2078
      %2080 = vmatprep.subr.mxu0 0.0
      %v2081 = vand.u32 %v1763, 4294901760
      %v2082 = vsub.f32 %v1763, %v2081
      %2083 = vmatpush1.msra.mxu0 %v2082
      %2084 = vmatprep.subr.mxu0 0.0
      %v2085 = vand.u32 %v1764, 4294901760
      %v2086 = vsub.f32 %v1764, %v2085
      %2087 = vmatpush1.msra.mxu0 %v2086
      %2088 = vmatprep.subr.mxu0 0.0
      %v2089 = vand.u32 %v1765, 4294901760
      %v2090 = vsub.f32 %v1765, %v2089
      %2091 = vmatpush1.msra.mxu0 %v2090
      %2092 = vmatprep.subr.mxu0 0.0
      %v2093 = vand.u32 %v1766, 4294901760
      %v2094 = vsub.f32 %v1766, %v2093
      %2095 = vmatpush1.msra.mxu0 %v2094
      %2096 = vmatprep.subr.mxu0 0.0
      %v2097 = vand.u32 %v1767, 4294901760
      %v2098 = vsub.f32 %v1767, %v2097
      %2099 = vmatpush1.msra.mxu0 %v2098
      %2100 = vmatprep.subr.mxu0 0.0
      %v2101 = vand.u32 %v1768, 4294901760
      %v2102 = vsub.f32 %v1768, %v2101
      %2103 = vmatpush1.msra.mxu0 %v2102
      %2104 = vmatprep.subr.mxu0 0.0
      %v2105 = vand.u32 %v1769, 4294901760
      %v2106 = vsub.f32 %v1769, %v2105
      %2107 = vmatpush1.msra.mxu0 %v2106
      %2108 = vmatprep.subr.mxu0 0.0
      %2109 = vmatpush1.msra.mxu0 0.0
      %2110 = vmatprep.subr.mxu0 0.0
      %2111 = vmatpush1.msra.mxu0 0.0
      %2112 = vmatprep.subr.mxu0 0.0
      %2113 = vmatpush1.msra.mxu0 0.0
      %2114 = vmatprep.subr.mxu0 0.0
      %2115 = vmatpush1.msra.mxu0 0.0
      %2116 = vmatprep.subr.mxu0 0.0
      %2117 = vmatpush1.msra.mxu0 0.0
      %2118 = vmatprep.subr.mxu0 0.0
      %2119 = vmatpush1.msra.mxu0 0.0
      %2120 = vmatprep.subr.mxu0 0.0
      %2121 = vmatpush1.msra.mxu0 0.0
      %2122 = vmatprep.subr.mxu0 0.0
      %2123 = vmatpush1.msra.mxu0 0.0
      %2124 = vmatprep.subr.mxu0 0.0
      %2125 = vmatpush1.msra.mxu0 0.0
      %2126 = vmatprep.subr.mxu0 0.0
      %2127 = vmatpush1.msra.mxu0 0.0
      %2128 = vmatprep.subr.mxu0 0.0
      %2129 = vmatpush1.msra.mxu0 0.0
      %2130 = vmatprep.subr.mxu0 0.0
      %2131 = vmatpush1.msra.mxu0 0.0
      %2132 = vmatprep.subr.mxu0 0.0
      %2133 = vmatpush1.msra.mxu0 0.0
      %2134 = vmatprep.subr.mxu0 0.0
      %2135 = vmatpush1.msra.mxu0 0.0
      %2136 = vmatprep.subr.mxu0 0.0
      %2137 = vmatpush1.msra.mxu0 0.0
      %2138 = vmatprep.subr.mxu0 0.0
      %2139 = vmatpush1.msra.mxu0 0.0
      %2140 = vmatprep.mubr.f32.mxu0 0.0
      %v2141 = vand.u32 %v1751, 4294901760
      %v2142 = vsub.f32 %v1751, %v2141
      %2143 = vmatmul.mubr.f32.gmra.mrb[0].mxu0 %v2142
      %v2144 = vpop.f32.mrb[0].mxu0
      %v2145 = vadd.f32 %v2029, %v2144
      %v2146 = vpop.f32.mrb[0].mxu0
      %2147 = vmatprep.mubr.f32.mxu0 0.0
      %v2148 = vand.u32 %v1752, 4294901760
      %v2149 = vsub.f32 %v1752, %v2148
      %2150 = vmatmul.mubr.f32.gmra.mrb[0].mxu0 %v2149
      %v2151 = vpop.f32.mrb[0].mxu0
      %v2152 = vadd.f32 %v2035, %v2151
      %v2153 = vpop.f32.mrb[0].mxu0
      %2154 = vmatprep.mubr.f32.mxu0 0.0
      %v2155 = vand.u32 %v1753, 4294901760
      %v2156 = vsub.f32 %v1753, %v2155
      %2157 = vmatmul.mubr.f32.gmra.mrb[0].mxu0 %v2156
      %v2158 = vpop.f32.mrb[0].mxu0
      %v2159 = vadd.f32 %v2041, %v2158
      %v2160 = vpop.f32.mrb[0].mxu0
      %2161 = vdwg.mxu0
      %2162 = vmatprep.subr.mxu0 0.0
      %v2163 = vand.u32 %v1754, 4294901760
      %2164 = vmatpush1.msra.mxu0 %v2163
      %2165 = vmatprep.subr.mxu0 0.0
      %v2166 = vand.u32 %v1755, 4294901760
      %2167 = vmatpush1.msra.mxu0 %v2166
      %2168 = vmatprep.subr.mxu0 0.0
      %v2169 = vand.u32 %v1756, 4294901760
      %2170 = vmatpush1.msra.mxu0 %v2169
      %2171 = vmatprep.subr.mxu0 0.0
      %v2172 = vand.u32 %v1757, 4294901760
      %2173 = vmatpush1.msra.mxu0 %v2172
      %2174 = vmatprep.subr.mxu0 0.0
      %v2175 = vand.u32 %v1758, 4294901760
      %2176 = vmatpush1.msra.mxu0 %v2175
      %2177 = vmatprep.subr.mxu0 0.0
      %v2178 = vand.u32 %v1759, 4294901760
      %2179 = vmatpush1.msra.mxu0 %v2178
      %2180 = vmatprep.subr.mxu0 0.0
      %v2181 = vand.u32 %v1760, 4294901760
      %2182 = vmatpush1.msra.mxu0 %v2181
      %2183 = vmatprep.subr.mxu0 0.0
      %v2184 = vand.u32 %v1761, 4294901760
      %2185 = vmatpush1.msra.mxu0 %v2184
      %2186 = vmatprep.subr.mxu0 0.0
      %v2187 = vand.u32 %v1762, 4294901760
      %2188 = vmatpush1.msra.mxu0 %v2187
      %2189 = vmatprep.subr.mxu0 0.0
      %v2190 = vand.u32 %v1763, 4294901760
      %2191 = vmatpush1.msra.mxu0 %v2190
      %2192 = vmatprep.subr.mxu0 0.0
      %v2193 = vand.u32 %v1764, 4294901760
      %2194 = vmatpush1.msra.mxu0 %v2193
      %2195 = vmatprep.subr.mxu0 0.0
      %v2196 = vand.u32 %v1765, 4294901760
      %2197 = vmatpush1.msra.mxu0 %v2196
      %2198 = vmatprep.subr.mxu0 0.0
      %v2199 = vand.u32 %v1766, 4294901760
      %2200 = vmatpush1.msra.mxu0 %v2199
      %2201 = vmatprep.subr.mxu0 0.0
      %v2202 = vand.u32 %v1767, 4294901760
      %2203 = vmatpush1.msra.mxu0 %v2202
      %2204 = vmatprep.subr.mxu0 0.0
      %v2205 = vand.u32 %v1768, 4294901760
      %2206 = vmatpush1.msra.mxu0 %v2205
      %2207 = vmatprep.subr.mxu0 0.0
      %v2208 = vand.u32 %v1769, 4294901760
      %2209 = vmatpush1.msra.mxu0 %v2208
      %2210 = vmatprep.subr.mxu0 0.0
      %2211 = vmatpush1.msra.mxu0 0.0
      %2212 = vmatprep.subr.mxu0 0.0
      %2213 = vmatpush1.msra.mxu0 0.0
      %2214 = vmatprep.subr.mxu0 0.0
      %2215 = vmatpush1.msra.mxu0 0.0
      %2216 = vmatprep.subr.mxu0 0.0
      %2217 = vmatpush1.msra.mxu0 0.0
      %2218 = vmatprep.subr.mxu0 0.0
      %2219 = vmatpush1.msra.mxu0 0.0
      %2220 = vmatprep.subr.mxu0 0.0
      %2221 = vmatpush1.msra.mxu0 0.0
      %2222 = vmatprep.subr.mxu0 0.0
      %2223 = vmatpush1.msra.mxu0 0.0
      %2224 = vmatprep.subr.mxu0 0.0
      %2225 = vmatpush1.msra.mxu0 0.0
      %2226 = vmatprep.subr.mxu0 0.0
      %2227 = vmatpush1.msra.mxu0 0.0
      %2228 = vmatprep.subr.mxu0 0.0
      %2229 = vmatpush1.msra.mxu0 0.0
      %2230 = vmatprep.subr.mxu0 0.0
      %2231 = vmatpush1.msra.mxu0 0.0
      %2232 = vmatprep.subr.mxu0 0.0
      %2233 = vmatpush1.msra.mxu0 0.0
      %2234 = vmatprep.subr.mxu0 0.0
      %2235 = vmatpush1.msra.mxu0 0.0
      %2236 = vmatprep.subr.mxu0 0.0
      %2237 = vmatpush1.msra.mxu0 0.0
      %2238 = vmatprep.subr.mxu0 0.0
      %2239 = vmatpush1.msra.mxu0 0.0
      %2240 = vmatprep.subr.mxu0 0.0
      %2241 = vmatpush1.msra.mxu0 0.0
      %2242 = vmatprep.mubr.f32.mxu0 0.0
      %v2243 = vand.u32 %v1751, 4294901760
      %v2244 = vsub.f32 %v1751, %v2243
      %v2245 = vand.u32 %v2244, 4294901760
      %2246 = vmatmul.mubr.f32.gmra.mrb[0].mxu0 %v2245
      %v2247 = vpop.f32.mrb[0].mxu0
      %v2248 = vadd.f32 %v2145, %v2247
      %v2249 = vpop.f32.mrb[0].mxu0
      %2250 = vmatprep.mubr.f32.mxu0 0.0
      %v2251 = vand.u32 %v1752, 4294901760
      %v2252 = vsub.f32 %v1752, %v2251
      %v2253 = vand.u32 %v2252, 4294901760
      %2254 = vmatmul.mubr.f32.gmra.mrb[0].mxu0 %v2253
      %v2255 = vpop.f32.mrb[0].mxu0
      %v2256 = vadd.f32 %v2152, %v2255
      %v2257 = vpop.f32.mrb[0].mxu0
      %2258 = vmatprep.mubr.f32.mxu0 0.0
      %v2259 = vand.u32 %v1753, 4294901760
      %v2260 = vsub.f32 %v1753, %v2259
      %v2261 = vand.u32 %v2260, 4294901760
      %2262 = vmatmul.mubr.f32.gmra.mrb[0].mxu0 %v2261
      %v2263 = vpop.f32.mrb[0].mxu0
      %v2264 = vadd.f32 %v2159, %v2263
      %v2265 = vpop.f32.mrb[0].mxu0
      %2266 = vdwg.mxu0
      %2267 = vmatprep.subr.mxu0 0.0
      %v2268 = vand.u32 %v1754, 4294901760
      %v2269 = vsub.f32 %v1754, %v2268
      %v2270 = vand.u32 %v2269, 4294901760
      %2271 = vmatpush1.msra.mxu0 %v2270
      %2272 = vmatprep.subr.mxu0 0.0
      %v2273 = vand.u32 %v1755, 4294901760
      %v2274 = vsub.f32 %v1755, %v2273
      %v2275 = vand.u32 %v2274, 4294901760
      %2276 = vmatpush1.msra.mxu0 %v2275
      %2277 = vmatprep.subr.mxu0 0.0
      %v2278 = vand.u32 %v1756, 4294901760
      %v2279 = vsub.f32 %v1756, %v2278
      %v2280 = vand.u32 %v2279, 4294901760
      %2281 = vmatpush1.msra.mxu0 %v2280
      %2282 = vmatprep.subr.mxu0 0.0
      %v2283 = vand.u32 %v1757, 4294901760
      %v2284 = vsub.f32 %v1757, %v2283
      %v2285 = vand.u32 %v2284, 4294901760
      %2286 = vmatpush1.msra.mxu0 %v2285
      %2287 = vmatprep.subr.mxu0 0.0
      %v2288 = vand.u32 %v1758, 4294901760
      %v2289 = vsub.f32 %v1758, %v2288
      %v2290 = vand.u32 %v2289, 4294901760
      %2291 = vmatpush1.msra.mxu0 %v2290
      %2292 = vmatprep.subr.mxu0 0.0
      %v2293 = vand.u32 %v1759, 4294901760
      %v2294 = vsub.f32 %v1759, %v2293
      %v2295 = vand.u32 %v2294, 4294901760
      %2296 = vmatpush1.msra.mxu0 %v2295
      %2297 = vmatprep.subr.mxu0 0.0
      %v2298 = vand.u32 %v1760, 4294901760
      %v2299 = vsub.f32 %v1760, %v2298
      %v2300 = vand.u32 %v2299, 4294901760
      %2301 = vmatpush1.msra.mxu0 %v2300
      %2302 = vmatprep.subr.mxu0 0.0
      %v2303 = vand.u32 %v1761, 4294901760
      %v2304 = vsub.f32 %v1761, %v2303
      %v2305 = vand.u32 %v2304, 4294901760
      %2306 = vmatpush1.msra.mxu0 %v2305
      %2307 = vmatprep.subr.mxu0 0.0
      %v2308 = vand.u32 %v1762, 4294901760
      %v2309 = vsub.f32 %v1762, %v2308
      %v2310 = vand.u32 %v2309, 4294901760
      %2311 = vmatpush1.msra.mxu0 %v2310
      %2312 = vmatprep.subr.mxu0 0.0
      %v2313 = vand.u32 %v1763, 4294901760
      %v2314 = vsub.f32 %v1763, %v2313
      %v2315 = vand.u32 %v2314, 4294901760
      %2316 = vmatpush1.msra.mxu0 %v2315
      %2317 = vmatprep.subr.mxu0 0.0
      %v2318 = vand.u32 %v1764, 4294901760
      %v2319 = vsub.f32 %v1764, %v2318
      %v2320 = vand.u32 %v2319, 4294901760
      %2321 = vmatpush1.msra.mxu0 %v2320
      %2322 = vmatprep.subr.mxu0 0.0
      %v2323 = vand.u32 %v1765, 4294901760
      %v2324 = vsub.f32 %v1765, %v2323
      %v2325 = vand.u32 %v2324, 4294901760
      %2326 = vmatpush1.msra.mxu0 %v2325
      %2327 = vmatprep.subr.mxu0 0.0
      %v2328 = vand.u32 %v1766, 4294901760
      %v2329 = vsub.f32 %v1766, %v2328
      %v2330 = vand.u32 %v2329, 4294901760
      %2331 = vmatpush1.msra.mxu0 %v2330
      %2332 = vmatprep.subr.mxu0 0.0
      %v2333 = vand.u32 %v1767, 4294901760
      %v2334 = vsub.f32 %v1767, %v2333
      %v2335 = vand.u32 %v2334, 4294901760
      %2336 = vmatpush1.msra.mxu0 %v2335
      %2337 = vmatprep.subr.mxu0 0.0
      %v2338 = vand.u32 %v1768, 4294901760
      %v2339 = vsub.f32 %v1768, %v2338
      %v2340 = vand.u32 %v2339, 4294901760
      %2341 = vmatpush1.msra.mxu0 %v2340
      %2342 = vmatprep.subr.mxu0 0.0
      %v2343 = vand.u32 %v1769, 4294901760
      %v2344 = vsub.f32 %v1769, %v2343
      %v2345 = vand.u32 %v2344, 4294901760
      %2346 = vmatpush1.msra.mxu0 %v2345
      %2347 = vmatprep.subr.mxu0 0.0
      %2348 = vmatpush1.msra.mxu0 0.0
      %2349 = vmatprep.subr.mxu0 0.0
      %2350 = vmatpush1.msra.mxu0 0.0
      %2351 = vmatprep.subr.mxu0 0.0
      %2352 = vmatpush1.msra.mxu0 0.0
      %2353 = vmatprep.subr.mxu0 0.0
      %2354 = vmatpush1.msra.mxu0 0.0
      %2355 = vmatprep.subr.mxu0 0.0
      %2356 = vmatpush1.msra.mxu0 0.0
      %2357 = vmatprep.subr.mxu0 0.0
      %2358 = vmatpush1.msra.mxu0 0.0
      %2359 = vmatprep.subr.mxu0 0.0
      %2360 = vmatpush1.msra.mxu0 0.0
      %2361 = vmatprep.subr.mxu0 0.0
      %2362 = vmatpush1.msra.mxu0 0.0
      %2363 = vmatprep.subr.mxu0 0.0
      %2364 = vmatpush1.msra.mxu0 0.0
      %2365 = vmatprep.subr.mxu0 0.0
      %2366 = vmatpush1.msra.mxu0 0.0
      %2367 = vmatprep.subr.mxu0 0.0
      %2368 = vmatpush1.msra.mxu0 0.0
      %2369 = vmatprep.subr.mxu0 0.0
      %2370 = vmatpush1.msra.mxu0 0.0
      %2371 = vmatprep.subr.mxu0 0.0
      %2372 = vmatpush1.msra.mxu0 0.0
      %2373 = vmatprep.subr.mxu0 0.0
      %2374 = vmatpush1.msra.mxu0 0.0
      %2375 = vmatprep.subr.mxu0 0.0
      %2376 = vmatpush1.msra.mxu0 0.0
      %2377 = vmatprep.subr.mxu0 0.0
      %2378 = vmatpush1.msra.mxu0 0.0
      %2379 = vmatprep.mubr.f32.mxu0 0.0
      %v2380 = vand.u32 %v1751, 4294901760
      %2381 = vmatmul.mubr.f32.gmra.mrb[0].mxu0 %v2380
      %v2382 = vpop.f32.mrb[0].mxu0
      %v2383 = vadd.f32 %v2248, %v2382
      %v2384 = vpop.f32.mrb[0].mxu0
      %2385 = vmatprep.mubr.f32.mxu0 0.0
      %v2386 = vand.u32 %v1752, 4294901760
      %2387 = vmatmul.mubr.f32.gmra.mrb[0].mxu0 %v2386
      %v2388 = vpop.f32.mrb[0].mxu0
      %v2389 = vadd.f32 %v2256, %v2388
      %v2390 = vpop.f32.mrb[0].mxu0
      %2391 = vmatprep.mubr.f32.mxu0 0.0
      %v2392 = vand.u32 %v1753, 4294901760
      %2393 = vmatmul.mubr.f32.gmra.mrb[0].mxu0 %v2392
      %v2394 = vpop.f32.mrb[0].mxu0
      %v2395 = vadd.f32 %v2264, %v2394
      %v2396 = vpop.f32.mrb[0].mxu0
      %2397 = vdwg.mxu0
      %2398 = vmatprep.subr.mxu0 0.0
      %v2399 = vand.u32 %v1754, 4294901760
      %2400 = vmatpush1.msra.mxu0 %v2399
      %2401 = vmatprep.subr.mxu0 0.0
      %v2402 = vand.u32 %v1755, 4294901760
      %2403 = vmatpush1.msra.mxu0 %v2402
      %2404 = vmatprep.subr.mxu0 0.0
      %v2405 = vand.u32 %v1756, 4294901760
      %2406 = vmatpush1.msra.mxu0 %v2405
      %2407 = vmatprep.subr.mxu0 0.0
      %v2408 = vand.u32 %v1757, 4294901760
      %2409 = vmatpush1.msra.mxu0 %v2408
      %2410 = vmatprep.subr.mxu0 0.0
      %v2411 = vand.u32 %v1758, 4294901760
      %2412 = vmatpush1.msra.mxu0 %v2411
      %2413 = vmatprep.subr.mxu0 0.0
      %v2414 = vand.u32 %v1759, 4294901760
      %2415 = vmatpush1.msra.mxu0 %v2414
      %2416 = vmatprep.subr.mxu0 0.0
      %v2417 = vand.u32 %v1760, 4294901760
      %2418 = vmatpush1.msra.mxu0 %v2417
      %2419 = vmatprep.subr.mxu0 0.0
      %v2420 = vand.u32 %v1761, 4294901760
      %2421 = vmatpush1.msra.mxu0 %v2420
      %2422 = vmatprep.subr.mxu0 0.0
      %v2423 = vand.u32 %v1762, 4294901760
      %2424 = vmatpush1.msra.mxu0 %v2423
      %2425 = vmatprep.subr.mxu0 0.0
      %v2426 = vand.u32 %v1763, 4294901760
      %2427 = vmatpush1.msra.mxu0 %v2426
      %2428 = vmatprep.subr.mxu0 0.0
      %v2429 = vand.u32 %v1764, 4294901760
      %2430 = vmatpush1.msra.mxu0 %v2429
      %2431 = vmatprep.subr.mxu0 0.0
      %v2432 = vand.u32 %v1765, 4294901760
      %2433 = vmatpush1.msra.mxu0 %v2432
      %2434 = vmatprep.subr.mxu0 0.0
      %v2435 = vand.u32 %v1766, 4294901760
      %2436 = vmatpush1.msra.mxu0 %v2435
      %2437 = vmatprep.subr.mxu0 0.0
      %v2438 = vand.u32 %v1767, 4294901760
      %2439 = vmatpush1.msra.mxu0 %v2438
      %2440 = vmatprep.subr.mxu0 0.0
      %v2441 = vand.u32 %v1768, 4294901760
      %2442 = vmatpush1.msra.mxu0 %v2441
      %2443 = vmatprep.subr.mxu0 0.0
      %v2444 = vand.u32 %v1769, 4294901760
      %2445 = vmatpush1.msra.mxu0 %v2444
      %2446 = vmatprep.subr.mxu0 0.0
      %2447 = vmatpush1.msra.mxu0 0.0
      %2448 = vmatprep.subr.mxu0 0.0
      %2449 = vmatpush1.msra.mxu0 0.0
      %2450 = vmatprep.subr.mxu0 0.0
      %2451 = vmatpush1.msra.mxu0 0.0
      %2452 = vmatprep.subr.mxu0 0.0
      %2453 = vmatpush1.msra.mxu0 0.0
      %2454 = vmatprep.subr.mxu0 0.0
      %2455 = vmatpush1.msra.mxu0 0.0
      %2456 = vmatprep.subr.mxu0 0.0
      %2457 = vmatpush1.msra.mxu0 0.0
      %2458 = vmatprep.subr.mxu0 0.0
      %2459 = vmatpush1.msra.mxu0 0.0
      %2460 = vmatprep.subr.mxu0 0.0
      %2461 = vmatpush1.msra.mxu0 0.0
      %2462 = vmatprep.subr.mxu0 0.0
      %2463 = vmatpush1.msra.mxu0 0.0
      %2464 = vmatprep.subr.mxu0 0.0
      %2465 = vmatpush1.msra.mxu0 0.0
      %2466 = vmatprep.subr.mxu0 0.0
      %2467 = vmatpush1.msra.mxu0 0.0
      %2468 = vmatprep.subr.mxu0 0.0
      %2469 = vmatpush1.msra.mxu0 0.0
      %2470 = vmatprep.subr.mxu0 0.0
      %2471 = vmatpush1.msra.mxu0 0.0
      %2472 = vmatprep.subr.mxu0 0.0
      %2473 = vmatpush1.msra.mxu0 0.0
      %2474 = vmatprep.subr.mxu0 0.0
      %2475 = vmatpush1.msra.mxu0 0.0
      %2476 = vmatprep.subr.mxu0 0.0
      %2477 = vmatpush1.msra.mxu0 0.0
      %2478 = vmatprep.mubr.f32.mxu0 0.0
      %v2479 = vand.u32 %v1751, 4294901760
      %2480 = vmatmul.mubr.f32.gmra.mrb[0].mxu0 %v2479
      %v2481 = vpop.f32.mrb[0].mxu0
      %v2482 = vadd.f32 %v2383, %v2481
      %v2483 = vpop.f32.mrb[0].mxu0
      %2484 = vmatprep.mubr.f32.mxu0 0.0
      %v2485 = vand.u32 %v1752, 4294901760
      %2486 = vmatmul.mubr.f32.gmra.mrb[0].mxu0 %v2485
      %v2487 = vpop.f32.mrb[0].mxu0
      %v2488 = vadd.f32 %v2389, %v2487
      %v2489 = vpop.f32.mrb[0].mxu0
      %2490 = vmatprep.mubr.f32.mxu0 0.0
      %v2491 = vand.u32 %v1753, 4294901760
      %2492 = vmatmul.mubr.f32.gmra.mrb[0].mxu0 %v2491
      %v2493 = vpop.f32.mrb[0].mxu0
      %v2494 = vadd.f32 %v2395, %v2493
      %v2495 = vpop.f32.mrb[0].mxu0
      %2496 = vdwg.mxu0
      %v2497 = vmax.f32 %v2482, 1e-10
      %v2498 = vmax.f32 %v2488, 1e-10
      %v2499 = vmax.f32 %v2494, 1e-10
      %v2500 = vlog2.pop %v2497
      %v2501 = vmul.f32 %v2500, 0.6931472
      %v2502 = vlog2.pop %v2498
      %v2503 = vmul.f32 %v2502, 0.6931472
      %v2504 = vlog2.pop %v2499
      %v2505 = vmul.f32 %v2504, 0.6931472
      %v2506 = vmul.f32 %v2501, 0.4342945
      %v2507 = vmul.f32 %v2503, 0.4342945
      %v2508 = vmul.f32 %v2505, 0.4342945
      %v2509 = vmul.f32 %v2506, 10.0
      %v2510 = vmul.f32 %v2507, 10.0
      %v2511 = vmul.f32 %v2508, 10.0
      %vm2512 = vcmask 261120
      %2513 = vst.msk [vmem:[%s197] sm:$0xff] %vm2512, %v2509
      %2514 = vst.msk [vmem:[%s197 + $0x8] sm:$0xff] %vm2512, %v2510
      %vm2515 = vcmask 253952
      %2516 = vst.msk [vmem:[%s197 + $0x10] sm:$0x1] %vm2515, %v2511
      %p2517 = scmp.lt.s32.totalorder %s15, 7
      %s2518 = scalar_select %p2517, %s15, 7
      %s2519 = smul.addr %s2518, 3
      %s2520 = smul.addr %s2519, 8
      %s2521 = scalar_lea.vmem %s4, %s2520
      // Predicated region
      $region37: #{tpu_custom_call.1} parent=35 // pred_check
        %p2522 = pneg %p122
      $region38: #{tpu_custom_call.1} parent=35 // pred_check_branch
        %2524 = sbr.rel (%p2522) target = $region40
      $region39: #{tpu_custom_call.1} parent=35 // pred_region
        _
      $region40: #{tpu_custom_call.1} parent=35 // pred_fallthru
        _
    $region36: #{tpu_custom_call.1} parent=5 // pred_fallthru
      _
    %p2525 = scmp.le.s32.totalorder 2, %s10
    // Predicated region
    $region41: #{tpu_custom_call.1} parent=5 // pred_check
      %p2526 = pneg %p2525
    $region42: #{tpu_custom_call.1} parent=5 // pred_check_branch
      %2528 = sbr.rel (%p2526) target = $region44
    $region43: #{tpu_custom_call.1} parent=5 // pred_region
      %s2529 = ssub.s32 %s10, 2
      // Predicated region
      $region45: #{tpu_custom_call.1} parent=43 // pred_check
        %p2530 = pneg %p128
      $region46: #{tpu_custom_call.1} parent=43 // pred_check_branch
        %2532 = sbr.rel (%p2530) target = $region48
      $region47: #{tpu_custom_call.1} parent=43 // pred_region
        %p2533 = scmp.lt.s32.totalorder %s16, 7
        %s2534 = scalar_select %p2533, %s16, 7
        %s2535 = smul.addr %s2534, 3
        %s2536 = smul.addr %s2535, 8
        %s2537 = scalar_lea.vmem %s4, %s2536
      $region48: #{tpu_custom_call.1} parent=43 // pred_fallthru
        _
    $region44: #{tpu_custom_call.1} parent=5 // pred_fallthru
      _
  $region6: #{tpu_custom_call.1} parent=0 // loop_footer
    %s14 = sadd.s32 1, %s10
  $region7: #{tpu_custom_call.1} parent=0 // loop_footer_branch
    %9 = sbr.rel target = $region3
  $region8: #{tpu_custom_call.1} parent=0 // loop_exit
    _

</llo_original>
